<compile_context>
chip_gen: v7x
topology: tpu7x:2x2x1
jax: 0.10.0
libtpu: 0.0.40
codegen_flags: <defaults>
</compile_context>

<pallas_src>
import functools

import jax
import jax.numpy as jnp
from jax.experimental import pallas as pl
from jax.experimental.pallas import tpu as pltpu


def _attention_kernel(x_ref, g_ref, beta_ref, wqkv_ref, wo_ref, bo_ref, o_ref,
                      *, heads, dim_head, scale, eps):
    # x_ref:   (1, N, D)        g_ref/beta_ref: (1, D)
    # wqkv_ref:(D, 3*inner)     wo_ref: (inner, D)      bo_ref: (1, D)
    # o_ref:   (1, N, D)
    inner = heads * dim_head

    # ---- LayerNorm (f32 for numerical stability) -------------------------
    x = x_ref[0].astype(jnp.float32)                      # (N, D)
    mu = jnp.mean(x, axis=-1, keepdims=True)
    xc = x - mu
    var = jnp.mean(xc * xc, axis=-1, keepdims=True)
    xn = xc * jax.lax.rsqrt(var + eps)
    xn = xn * g_ref[...].astype(jnp.float32) + beta_ref[...].astype(jnp.float32)

    # ---- QKV projection (MXU, f32 accumulate) ----------------------------
    qkv = jnp.dot(xn.astype(wqkv_ref.dtype), wqkv_ref[...],
                  preferred_element_type=jnp.float32)     # (N, 3*inner), f32

    # ---- Per-head scaled-dot-product attention ---------------------------
    head_outs = []
    for h in range(heads):  # static unroll; heads is small
        q = qkv[:, h * dim_head:(h + 1) * dim_head]                       # (N, dh)
        k = qkv[:, inner + h * dim_head:inner + (h + 1) * dim_head]       # (N, dh)
        v = qkv[:, 2 * inner + h * dim_head:2 * inner + (h + 1) * dim_head]

        s = jnp.dot(q, k.T, preferred_element_type=jnp.float32) * scale   # (N, N)
        s = s - jnp.max(s, axis=-1, keepdims=True)
        p = jnp.exp(s)
        p = p / jnp.sum(p, axis=-1, keepdims=True)
        # dropout(p) is identity for p=0.0 / inference.
        head_outs.append(jnp.dot(p, v, preferred_element_type=jnp.float32))

    attn = jnp.concatenate(head_outs, axis=-1)            # (N, inner), f32

    # ---- Output projection ------------------------------------------------
    y = jnp.dot(attn.astype(wo_ref.dtype), wo_ref[...],
                preferred_element_type=jnp.float32)
    y = y + bo_ref[...].astype(jnp.float32)
    # Final dropout is identity (p = 0.0 / inference).
    o_ref[0] = y.astype(o_ref.dtype)


def attention_forward(x, gamma, beta, w_qkv, w_out, b_out, *,
                      heads, dim_head, eps=1e-5):
    """x: (B, N, D). w_qkv: (D, 3*heads*dim_head). w_out: (heads*dim_head, D)."""
    B, N, D = x.shape
    inner = heads * dim_head
    scale = dim_head ** -0.5

    kernel = functools.partial(_attention_kernel, heads=heads,
                               dim_head=dim_head, scale=scale, eps=eps)

    return pl.pallas_call(
        kernel,
        out_shape=jax.ShapeDtypeStruct((B, N, D), x.dtype),
        grid_spec=pltpu.PrefetchScalarGridSpec(
            num_scalar_prefetch=0,
            grid=(B,),
            in_specs=[
                pl.BlockSpec((1, N, D), lambda b: (b, 0, 0)),        # x: per-batch tile
                pl.BlockSpec((1, D), lambda b: (0, 0)),              # LN gamma (resident)
                pl.BlockSpec((1, D), lambda b: (0, 0)),              # LN beta  (resident)
                pl.BlockSpec((D, 3 * inner), lambda b: (0, 0)),      # Wqkv     (resident)
                pl.BlockSpec((inner, D), lambda b: (0, 0)),          # Wo       (resident)
                pl.BlockSpec((1, D), lambda b: (0, 0)),              # bo       (resident)
            ],
            out_specs=pl.BlockSpec((1, N, D), lambda b: (b, 0, 0)),
        ),
        compiler_params=pltpu.CompilerParams(
            dimension_semantics=("parallel",),          # pipeline + v7x dual-TC
            vmem_limit_bytes=64 * 1024 * 1024,          # fits v7x 64 MiB budget
        ),
    )(x, gamma.reshape(1, D), beta.reshape(1, D), w_qkv, w_out,
      b_out.reshape(1, D))


def _reference(x, gamma, beta, w_qkv, w_out, b_out, heads, dim_head, eps=1e-5):
    B, N, D = x.shape
    inner = heads * dim_head
    mu = jnp.mean(x, axis=-1, keepdims=True)
    var = jnp.mean((x - mu) ** 2, axis=-1, keepdims=True)
    xn = (x - mu) / jnp.sqrt(var + eps) * gamma + beta
    qkv = xn @ w_qkv
    q, k, v = jnp.split(qkv, 3, axis=-1)
    rh = lambda t: t.reshape(B, N, heads, dim_head).transpose(0, 2, 1, 3)
    q, k, v = rh(q), rh(k), rh(v)
    s = jnp.einsum("bhnd,bhmd->bhnm", q, k) * (dim_head ** -0.5)
    p = jax.nn.softmax(s, axis=-1)
    o = jnp.einsum("bhnm,bhmd->bhnd", p, v)
    o = o.transpose(0, 2, 1, 3).reshape(B, N, inner)
    return o @ w_out + b_out


if __name__ == "__main__":
    # Small, lane-dense ViT-like shapes: batch=2, seq=8, dim=128,
    # heads=4, dim_head=32 -> inner_dim=128 (project_out=True).
    B, N, D = 2, 8, 128
    HEADS, DIM_HEAD = 4, 32
    INNER = HEADS * DIM_HEAD

    key = jax.random.PRNGKey(0)
    kx, kg, kb, kq, kw, kbo = jax.random.split(key, 6)

    x = jax.random.normal(kx, (B, N, D), dtype=jnp.float32)
    gamma = 1.0 + 0.1 * jax.random.normal(kg, (D,), dtype=jnp.float32)
    beta = 0.1 * jax.random.normal(kb, (D,), dtype=jnp.float32)
    # nn.Linear-style params, stored pre-transposed for row-major MXU dots.
    w_qkv = jax.random.normal(kq, (D, 3 * INNER), dtype=jnp.float32) / jnp.sqrt(D)
    w_out = jax.random.normal(kw, (INNER, D), dtype=jnp.float32) / jnp.sqrt(INNER)
    b_out = 0.01 * jax.random.normal(kbo, (D,), dtype=jnp.float32)

    # TODO(synk): training-mode dropout on the attention weights / output is not
    # implemented (p=0.0 / inference => identity).
    out = attention_forward(x, gamma, beta, w_qkv, w_out, b_out,
                            heads=HEADS, dim_head=DIM_HEAD)
    jax.block_until_ready(out)

    ref = _reference(x, gamma, beta, w_qkv, w_out, b_out, HEADS, DIM_HEAD)
    assert out.shape == (B, N, D)
    assert jnp.allclose(out, ref, atol=1e-4, rtol=1e-4), "mismatch vs reference"

    print("KERNEL_OK")
</pallas_src>

<mosaic_0001>
module attributes {stable_mosaic.version = 11 : i64} {
  func.func @_attention_kernel(%arg0: i32, %arg1: memref<1x8x128xf32, #tpu.memory_space<vmem>>, %arg2: memref<1x128xf32, #tpu.memory_space<vmem>>, %arg3: memref<1x128xf32, #tpu.memory_space<vmem>>, %arg4: memref<128x384xf32, #tpu.memory_space<vmem>>, %arg5: memref<128x128xf32, #tpu.memory_space<vmem>>, %arg6: memref<1x128xf32, #tpu.memory_space<vmem>>, %arg7: memref<1x8x128xf32, #tpu.memory_space<vmem>>) attributes {dimension_semantics = [#tpu.dimension_semantics<parallel>], iteration_bounds = array<i64: 2>, scalar_prefetch = 0 : i64, scratch_operands = 0 : i64, tpu.core_type = #tpu.core_type<tc>, window_params = [{transform_indices = @transform_0, window_bounds = array<i64: 1, 8, 128>}, {pipeline_mode = #tpu.pipeline_mode<synchronous>, transform_indices = @transform_1, window_bounds = array<i64: 1, 128>}, {pipeline_mode = #tpu.pipeline_mode<synchronous>, transform_indices = @transform_2, window_bounds = array<i64: 1, 128>}, {pipeline_mode = #tpu.pipeline_mode<synchronous>, transform_indices = @transform_3, window_bounds = array<i64: 128, 384>}, {pipeline_mode = #tpu.pipeline_mode<synchronous>, transform_indices = @transform_4, window_bounds = array<i64: 128, 128>}, {pipeline_mode = #tpu.pipeline_mode<synchronous>, transform_indices = @transform_5, window_bounds = array<i64: 1, 128>}, {transform_indices = @transform_6, window_bounds = array<i64: 1, 8, 128>}]} {
    %c0 = arith.constant 0 : index
    %c0_0 = arith.constant 0 : index
    %c0_1 = arith.constant 0 : index
    %0 = vector.load %arg1[%c0, %c0_0, %c0_1] : memref<1x8x128xf32, #tpu.memory_space<vmem>>, vector<1x8x128xf32>
    %1 = vector.shape_cast %0 : vector<1x8x128xf32> to vector<8x128xf32>
    %cst = arith.constant dense<0.000000e+00> : vector<8xf32>
    %2 = vector.multi_reduction <add>, %1, %cst [1] : vector<8x128xf32> to vector<8xf32>
    %3 = vector.shape_cast %2 : vector<8xf32> to vector<8x1xf32>
    %cst_2 = arith.constant 1.280000e+02 : f32
    %4 = vector.broadcast %cst_2 : f32 to vector<8x1xf32>
    %5 = arith.divf %3, %4 : vector<8x1xf32>
    %6 = vector.broadcast %5 : vector<8x1xf32> to vector<8x128xf32>
    %7 = arith.subf %1, %6 : vector<8x128xf32>
    %8 = arith.mulf %7, %7 : vector<8x128xf32>
    %cst_3 = arith.constant dense<0.000000e+00> : vector<8xf32>
    %9 = vector.multi_reduction <add>, %8, %cst_3 [1] : vector<8x128xf32> to vector<8xf32>
    %10 = vector.shape_cast %9 : vector<8xf32> to vector<8x1xf32>
    %cst_4 = arith.constant 1.280000e+02 : f32
    %11 = vector.broadcast %cst_4 : f32 to vector<8x1xf32>
    %12 = arith.divf %10, %11 : vector<8x1xf32>
    %cst_5 = arith.constant 9.99999974E-6 : f32
    %13 = vector.broadcast %cst_5 : f32 to vector<8x1xf32>
    %14 = arith.addf %12, %13 : vector<8x1xf32>
    %15 = math.rsqrt %14 : vector<8x1xf32>
    %16 = vector.broadcast %15 : vector<8x1xf32> to vector<8x128xf32>
    %17 = arith.mulf %7, %16 : vector<8x128xf32>
    %c0_6 = arith.constant 0 : index
    %c0_7 = arith.constant 0 : index
    %18 = vector.load %arg2[%c0_6, %c0_7] : memref<1x128xf32, #tpu.memory_space<vmem>>, vector<1x128xf32>
    %19 = vector.broadcast %18 : vector<1x128xf32> to vector<8x128xf32>
    %20 = arith.mulf %17, %19 : vector<8x128xf32>
    %c0_8 = arith.constant 0 : index
    %c0_9 = arith.constant 0 : index
    %21 = vector.load %arg3[%c0_8, %c0_9] : memref<1x128xf32, #tpu.memory_space<vmem>>, vector<1x128xf32>
    %22 = vector.broadcast %21 : vector<1x128xf32> to vector<8x128xf32>
    %23 = arith.addf %20, %22 : vector<8x128xf32>
    %c0_10 = arith.constant 0 : index
    %c0_11 = arith.constant 0 : index
    %24 = vector.load %arg4[%c0_10, %c0_11] : memref<128x384xf32, #tpu.memory_space<vmem>>, vector<128x384xf32>
    %cst_12 = arith.constant dense<0.000000e+00> : vector<8x384xf32>
    %25 = tpu.matmul %23, %24, %cst_12 {dimension_numbers = #tpu.dot_dimension_numbers<[1], [0], [0], [1], [0, 0, 1, 1], [], []>} : vector<8x128xf32>, vector<128x384xf32>, vector<8x384xf32> -> vector<8x384xf32>
    %26 = vector.extract_strided_slice %25 {offsets = [0, 0], sizes = [8, 32], strides = [1, 1]} : vector<8x384xf32> to vector<8x32xf32>
    %27 = vector.extract_strided_slice %25 {offsets = [0, 128], sizes = [8, 32], strides = [1, 1]} : vector<8x384xf32> to vector<8x32xf32>
    %28 = vector.extract_strided_slice %25 {offsets = [0, 256], sizes = [8, 32], strides = [1, 1]} : vector<8x384xf32> to vector<8x32xf32>
    %29 = tpu.transpose %27, [1, 0] : vector<8x32xf32> -> vector<32x8xf32>
    %cst_13 = arith.constant dense<0.000000e+00> : vector<8x8xf32>
    %30 = tpu.matmul %26, %29, %cst_13 {dimension_numbers = #tpu.dot_dimension_numbers<[1], [0], [0], [1], [0, 0, 1, 1], [], []>} : vector<8x32xf32>, vector<32x8xf32>, vector<8x8xf32> -> vector<8x8xf32>
    %cst_14 = arith.constant 0.176776692 : f32
    %31 = vector.broadcast %cst_14 : f32 to vector<8x8xf32>
    %32 = arith.mulf %30, %31 : vector<8x8xf32>
    %cst_15 = arith.constant dense<0xFF800000> : vector<8xf32>
    %33 = vector.multi_reduction <maximumf>, %32, %cst_15 [1] : vector<8x8xf32> to vector<8xf32>
    %34 = vector.shape_cast %33 : vector<8xf32> to vector<8x1xf32>
    %35 = vector.broadcast %34 : vector<8x1xf32> to vector<8x8xf32>
    %36 = arith.subf %32, %35 : vector<8x8xf32>
    %37 = math.exp %36 : vector<8x8xf32>
    %cst_16 = arith.constant dense<0.000000e+00> : vector<8xf32>
    %38 = vector.multi_reduction <add>, %37, %cst_16 [1] : vector<8x8xf32> to vector<8xf32>
    %39 = vector.shape_cast %38 : vector<8xf32> to vector<8x1xf32>
    %40 = vector.broadcast %39 : vector<8x1xf32> to vector<8x8xf32>
    %41 = arith.divf %37, %40 : vector<8x8xf32>
    %cst_17 = arith.constant dense<0.000000e+00> : vector<8x32xf32>
    %42 = tpu.matmul %41, %28, %cst_17 {dimension_numbers = #tpu.dot_dimension_numbers<[1], [0], [0], [1], [0, 0, 1, 1], [], []>} : vector<8x8xf32>, vector<8x32xf32>, vector<8x32xf32> -> vector<8x32xf32>
    %43 = vector.extract_strided_slice %25 {offsets = [0, 32], sizes = [8, 32], strides = [1, 1]} : vector<8x384xf32> to vector<8x32xf32>
    %44 = vector.extract_strided_slice %25 {offsets = [0, 160], sizes = [8, 32], strides = [1, 1]} : vector<8x384xf32> to vector<8x32xf32>
    %45 = vector.extract_strided_slice %25 {offsets = [0, 288], sizes = [8, 32], strides = [1, 1]} : vector<8x384xf32> to vector<8x32xf32>
    %46 = tpu.transpose %44, [1, 0] : vector<8x32xf32> -> vector<32x8xf32>
    %cst_18 = arith.constant dense<0.000000e+00> : vector<8x8xf32>
    %47 = tpu.matmul %43, %46, %cst_18 {dimension_numbers = #tpu.dot_dimension_numbers<[1], [0], [0], [1], [0, 0, 1, 1], [], []>} : vector<8x32xf32>, vector<32x8xf32>, vector<8x8xf32> -> vector<8x8xf32>
    %cst_19 = arith.constant 0.176776692 : f32
    %48 = vector.broadcast %cst_19 : f32 to vector<8x8xf32>
    %49 = arith.mulf %47, %48 : vector<8x8xf32>
    %cst_20 = arith.constant dense<0xFF800000> : vector<8xf32>
    %50 = vector.multi_reduction <maximumf>, %49, %cst_20 [1] : vector<8x8xf32> to vector<8xf32>
    %51 = vector.shape_cast %50 : vector<8xf32> to vector<8x1xf32>
    %52 = vector.broadcast %51 : vector<8x1xf32> to vector<8x8xf32>
    %53 = arith.subf %49, %52 : vector<8x8xf32>
    %54 = math.exp %53 : vector<8x8xf32>
    %cst_21 = arith.constant dense<0.000000e+00> : vector<8xf32>
    %55 = vector.multi_reduction <add>, %54, %cst_21 [1] : vector<8x8xf32> to vector<8xf32>
    %56 = vector.shape_cast %55 : vector<8xf32> to vector<8x1xf32>
    %57 = vector.broadcast %56 : vector<8x1xf32> to vector<8x8xf32>
    %58 = arith.divf %54, %57 : vector<8x8xf32>
    %cst_22 = arith.constant dense<0.000000e+00> : vector<8x32xf32>
    %59 = tpu.matmul %58, %45, %cst_22 {dimension_numbers = #tpu.dot_dimension_numbers<[1], [0], [0], [1], [0, 0, 1, 1], [], []>} : vector<8x8xf32>, vector<8x32xf32>, vector<8x32xf32> -> vector<8x32xf32>
    %60 = vector.extract_strided_slice %25 {offsets = [0, 64], sizes = [8, 32], strides = [1, 1]} : vector<8x384xf32> to vector<8x32xf32>
    %61 = vector.extract_strided_slice %25 {offsets = [0, 192], sizes = [8, 32], strides = [1, 1]} : vector<8x384xf32> to vector<8x32xf32>
    %62 = vector.extract_strided_slice %25 {offsets = [0, 320], sizes = [8, 32], strides = [1, 1]} : vector<8x384xf32> to vector<8x32xf32>
    %63 = tpu.transpose %61, [1, 0] : vector<8x32xf32> -> vector<32x8xf32>
    %cst_23 = arith.constant dense<0.000000e+00> : vector<8x8xf32>
    %64 = tpu.matmul %60, %63, %cst_23 {dimension_numbers = #tpu.dot_dimension_numbers<[1], [0], [0], [1], [0, 0, 1, 1], [], []>} : vector<8x32xf32>, vector<32x8xf32>, vector<8x8xf32> -> vector<8x8xf32>
    %cst_24 = arith.constant 0.176776692 : f32
    %65 = vector.broadcast %cst_24 : f32 to vector<8x8xf32>
    %66 = arith.mulf %64, %65 : vector<8x8xf32>
    %cst_25 = arith.constant dense<0xFF800000> : vector<8xf32>
    %67 = vector.multi_reduction <maximumf>, %66, %cst_25 [1] : vector<8x8xf32> to vector<8xf32>
    %68 = vector.shape_cast %67 : vector<8xf32> to vector<8x1xf32>
    %69 = vector.broadcast %68 : vector<8x1xf32> to vector<8x8xf32>
    %70 = arith.subf %66, %69 : vector<8x8xf32>
    %71 = math.exp %70 : vector<8x8xf32>
    %cst_26 = arith.constant dense<0.000000e+00> : vector<8xf32>
    %72 = vector.multi_reduction <add>, %71, %cst_26 [1] : vector<8x8xf32> to vector<8xf32>
    %73 = vector.shape_cast %72 : vector<8xf32> to vector<8x1xf32>
    %74 = vector.broadcast %73 : vector<8x1xf32> to vector<8x8xf32>
    %75 = arith.divf %71, %74 : vector<8x8xf32>
    %cst_27 = arith.constant dense<0.000000e+00> : vector<8x32xf32>
    %76 = tpu.matmul %75, %62, %cst_27 {dimension_numbers = #tpu.dot_dimension_numbers<[1], [0], [0], [1], [0, 0, 1, 1], [], []>} : vector<8x8xf32>, vector<8x32xf32>, vector<8x32xf32> -> vector<8x32xf32>
    %77 = vector.extract_strided_slice %25 {offsets = [0, 96], sizes = [8, 32], strides = [1, 1]} : vector<8x384xf32> to vector<8x32xf32>
    %78 = vector.extract_strided_slice %25 {offsets = [0, 224], sizes = [8, 32], strides = [1, 1]} : vector<8x384xf32> to vector<8x32xf32>
    %79 = vector.extract_strided_slice %25 {offsets = [0, 352], sizes = [8, 32], strides = [1, 1]} : vector<8x384xf32> to vector<8x32xf32>
    %80 = tpu.transpose %78, [1, 0] : vector<8x32xf32> -> vector<32x8xf32>
    %cst_28 = arith.constant dense<0.000000e+00> : vector<8x8xf32>
    %81 = tpu.matmul %77, %80, %cst_28 {dimension_numbers = #tpu.dot_dimension_numbers<[1], [0], [0], [1], [0, 0, 1, 1], [], []>} : vector<8x32xf32>, vector<32x8xf32>, vector<8x8xf32> -> vector<8x8xf32>
    %cst_29 = arith.constant 0.176776692 : f32
    %82 = vector.broadcast %cst_29 : f32 to vector<8x8xf32>
    %83 = arith.mulf %81, %82 : vector<8x8xf32>
    %cst_30 = arith.constant dense<0xFF800000> : vector<8xf32>
    %84 = vector.multi_reduction <maximumf>, %83, %cst_30 [1] : vector<8x8xf32> to vector<8xf32>
    %85 = vector.shape_cast %84 : vector<8xf32> to vector<8x1xf32>
    %86 = vector.broadcast %85 : vector<8x1xf32> to vector<8x8xf32>
    %87 = arith.subf %83, %86 : vector<8x8xf32>
    %88 = math.exp %87 : vector<8x8xf32>
    %cst_31 = arith.constant dense<0.000000e+00> : vector<8xf32>
    %89 = vector.multi_reduction <add>, %88, %cst_31 [1] : vector<8x8xf32> to vector<8xf32>
    %90 = vector.shape_cast %89 : vector<8xf32> to vector<8x1xf32>
    %91 = vector.broadcast %90 : vector<8x1xf32> to vector<8x8xf32>
    %92 = arith.divf %88, %91 : vector<8x8xf32>
    %cst_32 = arith.constant dense<0.000000e+00> : vector<8x32xf32>
    %93 = tpu.matmul %92, %79, %cst_32 {dimension_numbers = #tpu.dot_dimension_numbers<[1], [0], [0], [1], [0, 0, 1, 1], [], []>} : vector<8x8xf32>, vector<8x32xf32>, vector<8x32xf32> -> vector<8x32xf32>
    %94 = tpu.concatenate %42, %59, %76, %93 in 1 : vector<8x32xf32>, vector<8x32xf32>, vector<8x32xf32>, vector<8x32xf32> -> vector<8x128xf32>
    %c0_33 = arith.constant 0 : index
    %c0_34 = arith.constant 0 : index
    %95 = vector.load %arg5[%c0_33, %c0_34] : memref<128x128xf32, #tpu.memory_space<vmem>>, vector<128x128xf32>
    %cst_35 = arith.constant dense<0.000000e+00> : vector<8x128xf32>
    %96 = tpu.matmul %94, %95, %cst_35 {dimension_numbers = #tpu.dot_dimension_numbers<[1], [0], [0], [1], [0, 0, 1, 1], [], []>} : vector<8x128xf32>, vector<128x128xf32>, vector<8x128xf32> -> vector<8x128xf32>
    %c0_36 = arith.constant 0 : index
    %c0_37 = arith.constant 0 : index
    %97 = vector.load %arg6[%c0_36, %c0_37] : memref<1x128xf32, #tpu.memory_space<vmem>>, vector<1x128xf32>
    %98 = vector.broadcast %97 : vector<1x128xf32> to vector<8x128xf32>
    %99 = arith.addf %96, %98 : vector<8x128xf32>
    %c0_38 = arith.constant 0 : index
    %c0_39 = arith.constant 0 : index
    %c0_40 = arith.constant 0 : index
    %100 = vector.load %arg7[%c0_38, %c0_39, %c0_40] : memref<1x8x128xf32, #tpu.memory_space<vmem>>, vector<1x8x128xf32>
    %101 = vector.shape_cast %100 : vector<1x8x128xf32> to vector<8x128xf32>
    %102 = vector.shape_cast %99 : vector<8x128xf32> to vector<1x8x128xf32>
    tpu.vector_store %arg7[%c0_38, %c0_39, %c0_40], %102 {strides = array<i32>} : memref<1x8x128xf32, #tpu.memory_space<vmem>>, vector<1x8x128xf32>,
    return
  }
  func.func @transform_0(%arg0: i32) -> (i32, i32, i32) {
    %c0_i32 = arith.constant 0 : i32
    %c0_i32_0 = arith.constant 0 : i32
    %c0_i32_1 = arith.constant 0 : i32
    return %arg0, %c0_i32, %c0_i32_0 : i32, i32, i32
  }
  func.func @transform_1(%arg0: i32) -> (i32, i32) {
    %c0_i32 = arith.constant 0 : i32
    %c0_i32_0 = arith.constant 0 : i32
    %c0_i32_1 = arith.constant 0 : i32
    return %c0_i32, %c0_i32_0 : i32, i32
  }
  func.func @transform_2(%arg0: i32) -> (i32, i32) {
    %c0_i32 = arith.constant 0 : i32
    %c0_i32_0 = arith.constant 0 : i32
    %c0_i32_1 = arith.constant 0 : i32
    return %c0_i32, %c0_i32_0 : i32, i32
  }
  func.func @transform_3(%arg0: i32) -> (i32, i32) {
    %c0_i32 = arith.constant 0 : i32
    %c0_i32_0 = arith.constant 0 : i32
    %c0_i32_1 = arith.constant 0 : i32
    return %c0_i32, %c0_i32_0 : i32, i32
  }
  func.func @transform_4(%arg0: i32) -> (i32, i32) {
    %c0_i32 = arith.constant 0 : i32
    %c0_i32_0 = arith.constant 0 : i32
    %c0_i32_1 = arith.constant 0 : i32
    return %c0_i32, %c0_i32_0 : i32, i32
  }
  func.func @transform_5(%arg0: i32) -> (i32, i32) {
    %c0_i32 = arith.constant 0 : i32
    %c0_i32_0 = arith.constant 0 : i32
    %c0_i32_1 = arith.constant 0 : i32
    return %c0_i32, %c0_i32_0 : i32, i32
  }
  func.func @transform_6(%arg0: i32) -> (i32, i32, i32) {
    %c0_i32 = arith.constant 0 : i32
    %c0_i32_0 = arith.constant 0 : i32
    %c0_i32_1 = arith.constant 0 : i32
    return %arg0, %c0_i32, %c0_i32_0 : i32, i32, i32
  }
}

</mosaic_0001>

<llo_original>
// kernel: tpu_custom_call.1
$region0: #{tpu_custom_call.1}
  #allocation0 [shape = 'u32[]', space=smem, size = 0x4, offset = 0x4, fixed_abs, tag = 'smem constant byte address 0x4 - core index']
  #allocation1 [shape = 'u32[144,128]{1,0:T(1,128)}', space=vmem, size = 0x12000, scoped, tag = 'internal scratch']
  %s0 = inlined_call_operand.hbm [shape: f32[2,8,128], index: 0, kind: input, shape index: {}]
  %s1 = inlined_call_operand.hbm [shape: f32[1,128], index: 1, kind: input, shape index: {}]
  %s2 = inlined_call_operand.hbm [shape: f32[1,128], index: 2, kind: input, shape index: {}]
  %s3 = inlined_call_operand.hbm [shape: f32[128,384], index: 3, kind: input, shape index: {}]
  %s4 = inlined_call_operand.hbm [shape: f32[128,128], index: 4, kind: input, shape index: {}]
  %s5 = inlined_call_operand.hbm [shape: f32[1,128], index: 5, kind: input, shape index: {}]
  %s6 = inlined_call_operand.hbm [shape: f32[2,8,128], index: 6, kind: output, shape index: {}]
  %s7 = sld [smem:[#allocation0]]
  $region81: #{tpu_custom_call.1} parent=0
    _
  %s9 = ssub.s32 1, %s7
  %s10 = scalar_select 0, %s9, %s7
  $region1: #{tpu_custom_call.1} parent=0
    #allocation2 [shape = 'u8[8192]{0}', space=vmem, size = 0x2000, scoped, tag = 'input window, operand 0']
    #allocation3 [shape = 's32[2]{0}', space=sflag, size = 0x8, scoped, tag = 'scoped memory for tpu_custom_call.1']
    #allocation4 [shape = 's32[2]{0}', space=sflag, size = 0x8, scoped, tag = 'scoped memory for tpu_custom_call.1']
    #allocation5 [shape = 'u8[512]{0}', space=vmem, size = 0x400, scoped, tag = 'input window, operand 1, single buffered']
    #allocation6 [shape = 's32[1]{0}', space=sflag, size = 0x4, scoped, tag = 'scoped memory for tpu_custom_call.1']
    #allocation7 [shape = 'u8[512]{0}', space=vmem, size = 0x400, scoped, tag = 'input window, operand 2, single buffered']
    #allocation8 [shape = 'u8[196608]{0}', space=vmem, size = 0x30000, scoped, tag = 'input window, operand 3, single buffered']
    #allocation9 [shape = 's32[1]{0}', space=sflag, size = 0x4, scoped, tag = 'scoped memory for tpu_custom_call.1']
    #allocation10 [shape = 'u8[65536]{0}', space=vmem, size = 0x10000, scoped, tag = 'input window, operand 4, single buffered']
    #allocation11 [shape = 'u8[512]{0}', space=vmem, size = 0x400, scoped, tag = 'input window, operand 5, single buffered']
    #allocation12 [shape = 's32[1]{0}', space=sflag, size = 0x4, scoped, tag = 'scoped memory for tpu_custom_call.1']
    #allocation13 [shape = 'u8[8192]{0}', space=vmem, size = 0x2000, scoped, tag = 'output window, operand 0']
    %11 = vsyncpa [#allocation3], 0
    %s12 = scalar_lea.sflag [#allocation3], 1
    %13 = vsyncpa %s12, 0
    %14 = vsyncpa [#allocation6], 0
    %15 = vsyncpa [#allocation9], 0
    %16 = vsyncpa [#allocation12], 0
    %17 = vsyncpa [#allocation4], 0
    %s18 = scalar_lea.sflag [#allocation4], 1
    %19 = vsyncpa %s18, 0
    loop: start=0, step=1, limit=4
    $region2: #{tpu_custom_call.1} parent=1 // loop_pre_header
      _
    $region3: #{tpu_custom_call.1} parent=1 // loop_header
      %s21 = sphi 0, %s25
      %p22 = scmp.ge.s32.totalorder %s21, 4
      %s31 = sphi 0, %s33
      %s34 = sphi 0, %s31
      %s35 = sphi 0, %s34
      %s51 = sphi 0, %s35
      %s55 = sphi 0, %s55
      %s57 = sphi 0, %s55
      %s58 = sphi 0, %s57
      %s72 = sphi 0, %s58
      %s76 = sphi 0, %s76
      %s78 = sphi 0, %s76
      %s79 = sphi 0, %s78
      %s93 = sphi 0, %s79
      %s97 = sphi 0, %s97
      %s99 = sphi 0, %s97
      %s100 = sphi 0, %s99
      %s114 = sphi 0, %s100
      %s118 = sphi 0, %s118
      %s120 = sphi 0, %s118
      %s121 = sphi 0, %s120
      %s135 = sphi 0, %s121
      %s139 = sphi 0, %s139
      %s141 = sphi 0, %s139
      %s142 = sphi 0, %s141
      %s156 = sphi 0, %s142
      %s162 = sphi 0, %s164
      %s165 = sphi 0, %s162
      %s166 = sphi 0, %s165
      %s182 = sphi 0, %s166
    $region4: #{tpu_custom_call.1} parent=1 // loop_header_branch
      %24 = sbr.rel (%p22) target = $region8
    $region5: #{tpu_custom_call.1} parent=1 // loop_body
      %s26 = ssub.s32 %s21, 1
      %s27 = ssub.s32 %s21, 2
      %s28 = sadd.s32 %s21, 1
      %s29 = ssub.s32 %s21, %s28
      %p30 = scmp.eq.s32.totalorder %s29, 0
      %s32 = sadd.s32 %s31, 1
      %s33 = scalar_select %p30, %s31, %s32
      %p36 = pneg %p30
      %p37 = scmp.eq.s32.totalorder %s21, 1
      %p38 = por %p36, %p37
      %p39 = scmp.ne.s32.totalorder %s31, %s34
      %p40 = scmp.eq.s32.totalorder %s21, 0
      %p41 = por %p39, %p40
      %p42 = scmp.ne.s32.totalorder %s31, %s34
      %p43 = scmp.eq.s32.totalorder %s26, 1
      %p44 = por %p42, %p43
      %p45 = scmp.ne.s32.totalorder %s34, %s35
      %p46 = scmp.eq.s32.totalorder %s26, 0
      %p47 = por %p45, %p46
      %p48 = scmp.ne.s32.totalorder %s34, %s35
      %p49 = scmp.eq.s32.totalorder %s27, 1
      %p50 = por %p48, %p49
      %p52 = scmp.ne.s32.totalorder %s35, %s51
      %p53 = scmp.eq.s32.totalorder %s27, 0
      %p54 = por %p52, %p53
      %s56 = sadd.s32 %s55, 1
      %p59 = scmp.eq.s32.totalorder %s21, 1
      %p60 = scmp.ne.s32.totalorder %s55, %s57
      %p61 = scmp.eq.s32.totalorder %s21, 0
      %p62 = por %p60, %p61
      %p63 = scmp.ne.s32.totalorder %s55, %s57
      %p64 = scmp.eq.s32.totalorder %s26, 1
      %p65 = por %p63, %p64
      %p66 = scmp.ne.s32.totalorder %s57, %s58
      %p67 = scmp.eq.s32.totalorder %s26, 0
      %p68 = por %p66, %p67
      %p69 = scmp.ne.s32.totalorder %s57, %s58
      %p70 = scmp.eq.s32.totalorder %s27, 1
      %p71 = por %p69, %p70
      %p73 = scmp.ne.s32.totalorder %s58, %s72
      %p74 = scmp.eq.s32.totalorder %s27, 0
      %p75 = por %p73, %p74
      %s77 = sadd.s32 %s76, 1
      %p80 = scmp.eq.s32.totalorder %s21, 1
      %p81 = scmp.ne.s32.totalorder %s76, %s78
      %p82 = scmp.eq.s32.totalorder %s21, 0
      %p83 = por %p81, %p82
      %p84 = scmp.ne.s32.totalorder %s76, %s78
      %p85 = scmp.eq.s32.totalorder %s26, 1
      %p86 = por %p84, %p85
      %p87 = scmp.ne.s32.totalorder %s78, %s79
      %p88 = scmp.eq.s32.totalorder %s26, 0
      %p89 = por %p87, %p88
      %p90 = scmp.ne.s32.totalorder %s78, %s79
      %p91 = scmp.eq.s32.totalorder %s27, 1
      %p92 = por %p90, %p91
      %p94 = scmp.ne.s32.totalorder %s79, %s93
      %p95 = scmp.eq.s32.totalorder %s27, 0
      %p96 = por %p94, %p95
      %s98 = sadd.s32 %s97, 1
      %p101 = scmp.eq.s32.totalorder %s21, 1
      %p102 = scmp.ne.s32.totalorder %s97, %s99
      %p103 = scmp.eq.s32.totalorder %s21, 0
      %p104 = por %p102, %p103
      %p105 = scmp.ne.s32.totalorder %s97, %s99
      %p106 = scmp.eq.s32.totalorder %s26, 1
      %p107 = por %p105, %p106
      %p108 = scmp.ne.s32.totalorder %s99, %s100
      %p109 = scmp.eq.s32.totalorder %s26, 0
      %p110 = por %p108, %p109
      %p111 = scmp.ne.s32.totalorder %s99, %s100
      %p112 = scmp.eq.s32.totalorder %s27, 1
      %p113 = por %p111, %p112
      %p115 = scmp.ne.s32.totalorder %s100, %s114
      %p116 = scmp.eq.s32.totalorder %s27, 0
      %p117 = por %p115, %p116
      %s119 = sadd.s32 %s118, 1
      %p122 = scmp.eq.s32.totalorder %s21, 1
      %p123 = scmp.ne.s32.totalorder %s118, %s120
      %p124 = scmp.eq.s32.totalorder %s21, 0
      %p125 = por %p123, %p124
      %p126 = scmp.ne.s32.totalorder %s118, %s120
      %p127 = scmp.eq.s32.totalorder %s26, 1
      %p128 = por %p126, %p127
      %p129 = scmp.ne.s32.totalorder %s120, %s121
      %p130 = scmp.eq.s32.totalorder %s26, 0
      %p131 = por %p129, %p130
      %p132 = scmp.ne.s32.totalorder %s120, %s121
      %p133 = scmp.eq.s32.totalorder %s27, 1
      %p134 = por %p132, %p133
      %p136 = scmp.ne.s32.totalorder %s121, %s135
      %p137 = scmp.eq.s32.totalorder %s27, 0
      %p138 = por %p136, %p137
      %s140 = sadd.s32 %s139, 1
      %p143 = scmp.eq.s32.totalorder %s21, 1
      %p144 = scmp.ne.s32.totalorder %s139, %s141
      %p145 = scmp.eq.s32.totalorder %s21, 0
      %p146 = por %p144, %p145
      %p147 = scmp.ne.s32.totalorder %s139, %s141
      %p148 = scmp.eq.s32.totalorder %s26, 1
      %p149 = por %p147, %p148
      %p150 = scmp.ne.s32.totalorder %s141, %s142
      %p151 = scmp.eq.s32.totalorder %s26, 0
      %p152 = por %p150, %p151
      %p153 = scmp.ne.s32.totalorder %s141, %s142
      %p154 = scmp.eq.s32.totalorder %s27, 1
      %p155 = por %p153, %p154
      %p157 = scmp.ne.s32.totalorder %s142, %s156
      %p158 = scmp.eq.s32.totalorder %s27, 0
      %p159 = por %p157, %p158
      %s160 = ssub.s32 %s21, %s28
      %p161 = scmp.eq.s32.totalorder %s160, 0
      %s163 = sadd.s32 %s162, 1
      %s164 = scalar_select %p161, %s162, %s163
      %p167 = pneg %p161
      %p168 = scmp.eq.s32.totalorder %s21, 1
      %p169 = por %p167, %p168
      %p170 = scmp.ne.s32.totalorder %s162, %s165
      %p171 = scmp.eq.s32.totalorder %s21, 0
      %p172 = por %p170, %p171
      %p173 = scmp.ne.s32.totalorder %s162, %s165
      %p174 = scmp.eq.s32.totalorder %s26, 1
      %p175 = por %p173, %p174
      %p176 = scmp.ne.s32.totalorder %s165, %s166
      %p177 = scmp.eq.s32.totalorder %s26, 0
      %p178 = por %p176, %p177
      %p179 = scmp.ne.s32.totalorder %s165, %s166
      %p180 = scmp.eq.s32.totalorder %s27, 1
      %p181 = por %p179, %p180
      %p183 = scmp.ne.s32.totalorder %s166, %s182
      %p184 = scmp.eq.s32.totalorder %s27, 0
      %p185 = por %p183, %p184
      %p186 = scmp.le.s32.totalorder 1, %s21
      %p187 = scmp.lt.s32.totalorder %s21, 3
      %p188 = pnand %p186, %p187
      %p189 = pneg %p188
      // Predicated region
      $region9: #{tpu_custom_call.1} parent=5 // pred_check
        _
      $region10: #{tpu_custom_call.1} parent=5 // pred_check_branch
        %191 = sbr.rel (%p188) target = $region12
      $region11: #{tpu_custom_call.1} parent=5 // pred_region
        %s192 = ssub.s32 %s21, 1
        // Predicated region
        $region13: #{tpu_custom_call.1} parent=11 // pred_check
          %p193 = pneg %p68
        $region14: #{tpu_custom_call.1} parent=11 // pred_check_branch
          %195 = sbr.rel (%p193) target = $region16
        $region15: #{tpu_custom_call.1} parent=11 // pred_region
          %s197 = ssub.s32 16, 16
          %198 = vsyncadd [#allocation6], %s197
          %s200 = sshll.u32 [#allocation5], 4
          %s201 = int_to_ptr.vmem [resolvable:$true] %s200
          %203 = dma.hbm_to_vmem [thread:$0]  %s1, 16, %s201, [#allocation6]
        $region16: #{tpu_custom_call.1} parent=11 // pred_fallthru
          _
        // Predicated region
        $region17: #{tpu_custom_call.1} parent=11 // pred_check
          %p204 = pneg %p89
        $region18: #{tpu_custom_call.1} parent=11 // pred_check_branch
          %206 = sbr.rel (%p204) target = $region20
        $region19: #{tpu_custom_call.1} parent=11 // pred_region
          %s208 = ssub.s32 16, 16
          %209 = vsyncadd [#allocation6], %s208
          %s211 = sshll.u32 [#allocation7], 4
          %s212 = int_to_ptr.vmem [resolvable:$true] %s211
          %214 = dma.hbm_to_vmem [thread:$0]  %s2, 16, %s212, [#allocation6]
        $region20: #{tpu_custom_call.1} parent=11 // pred_fallthru
          _
        // Predicated region
        $region21: #{tpu_custom_call.1} parent=11 // pred_check
          %p215 = pneg %p110
        $region22: #{tpu_custom_call.1} parent=11 // pred_check_branch
          %217 = sbr.rel (%p215) target = $region24
        $region23: #{tpu_custom_call.1} parent=11 // pred_region
          %s219 = ssub.s32 6144, 6144
          %220 = vsyncadd [#allocation9], %s219
          %s221 = sshll.u32 [#allocation8], 4
          %s222 = int_to_ptr.vmem [resolvable:$true] %s221
          %227 = dma.hbm_to_vmem [thread:$0]  %s3, 6144, %s222, [#allocation9], 384, 384, 24
        $region24: #{tpu_custom_call.1} parent=11 // pred_fallthru
          _
        // Predicated region
        $region25: #{tpu_custom_call.1} parent=11 // pred_check
          %p228 = pneg %p131
        $region26: #{tpu_custom_call.1} parent=11 // pred_check_branch
          %230 = sbr.rel (%p228) target = $region28
        $region27: #{tpu_custom_call.1} parent=11 // pred_region
          %s232 = ssub.s32 2048, 2048
          %233 = vsyncadd [#allocation9], %s232
          %s234 = sshll.u32 [#allocation10], 4
          %s235 = int_to_ptr.vmem [resolvable:$true] %s234
          %240 = dma.hbm_to_vmem [thread:$0]  %s4, 2048, %s235, [#allocation9], 128, 128, 8
        $region28: #{tpu_custom_call.1} parent=11 // pred_fallthru
          _
        // Predicated region
        $region29: #{tpu_custom_call.1} parent=11 // pred_check
          %p241 = pneg %p152
        $region30: #{tpu_custom_call.1} parent=11 // pred_check_branch
          %243 = sbr.rel (%p241) target = $region32
        $region31: #{tpu_custom_call.1} parent=11 // pred_region
          %s245 = ssub.s32 16, 16
          %246 = vsyncadd [#allocation12], %s245
          %s248 = sshll.u32 [#allocation11], 4
          %s249 = int_to_ptr.vmem [resolvable:$true] %s248
          %251 = dma.hbm_to_vmem [thread:$0]  %s5, 16, %s249, [#allocation12]
        $region32: #{tpu_custom_call.1} parent=11 // pred_fallthru
          _
      $region12: #{tpu_custom_call.1} parent=5 // pred_fallthru
        _
      %p252 = scmp.lt.s32.totalorder %s21, 2
      // Predicated region
      $region33: #{tpu_custom_call.1} parent=5 // pred_check
        %p253 = pneg %p252
      $region34: #{tpu_custom_call.1} parent=5 // pred_check_branch
        %255 = sbr.rel (%p253) target = $region36
      $region35: #{tpu_custom_call.1} parent=5 // pred_region
        // Predicated region
        $region37: #{tpu_custom_call.1} parent=35 // pred_check
          %p256 = pneg %p41
        $region38: #{tpu_custom_call.1} parent=35 // pred_check_branch
          %258 = sbr.rel (%p256) target = $region40
        $region39: #{tpu_custom_call.1} parent=35 // pred_region
          %s259 = sand.u32 %s31, 1
          %s260 = scalar_lea.sflag [#allocation3], %s259
          %s261 = sand.u32 %s31, 1
          %s262 = smul.addr %s261, 8
          %s263 = scalar_lea.vmem [#allocation2], %s262
          %s265 = ssub.s32 128, 128
          %266 = vsyncadd %s260, %s265
          %s267 = smul.addr %s21, 128
          %s268 = scalar_lea.hbm %s0, %s267
          %s270 = sshll.u32 %s263, 4
          %s271 = int_to_ptr.vmem [resolvable:$true] %s270
          %273 = dma.hbm_to_vmem [thread:$0]  %s268, 128, %s271, %s260
        $region40: #{tpu_custom_call.1} parent=35 // pred_fallthru
          _
      $region36: #{tpu_custom_call.1} parent=5 // pred_fallthru
        _
      %p274 = scmp.le.s32.totalorder 1, %s21
      %p275 = scmp.lt.s32.totalorder %s21, 3
      %p276 = pnand %p274, %p275
      %p277 = pneg %p276
      // Predicated region
      $region41: #{tpu_custom_call.1} parent=5 // pred_check
        _
      $region42: #{tpu_custom_call.1} parent=5 // pred_check_branch
        %279 = sbr.rel (%p276) target = $region44
      $region43: #{tpu_custom_call.1} parent=5 // pred_region
        %s280 = ssub.s32 %s21, 1
        %s281 = sand.u32 %s34, 1
        %s282 = scalar_lea.sflag [#allocation3], %s281
        %s283 = sand.u32 %s34, 1
        %s284 = smul.addr %s283, 8
        %s285 = scalar_lea.vmem [#allocation2], %s284
        // Predicated region
        $region45: #{tpu_custom_call.1} parent=43 // pred_check
          %p286 = pneg %p47
        $region46: #{tpu_custom_call.1} parent=43 // pred_check_branch
          %288 = sbr.rel (%p286) target = $region48
        $region47: #{tpu_custom_call.1} parent=43 // pred_region
          %289 = dma.done %s282, 128
        $region48: #{tpu_custom_call.1} parent=43 // pred_fallthru
          _
        // Predicated region
        $region49: #{tpu_custom_call.1} parent=43 // pred_check
          %p290 = pneg %p68
        $region50: #{tpu_custom_call.1} parent=43 // pred_check_branch
          %292 = sbr.rel (%p290) target = $region52
        $region51: #{tpu_custom_call.1} parent=43 // pred_region
          %293 = dma.done [#allocation6], 16
        $region52: #{tpu_custom_call.1} parent=43 // pred_fallthru
          _
        // Predicated region
        $region53: #{tpu_custom_call.1} parent=43 // pred_check
          %p294 = pneg %p89
        $region54: #{tpu_custom_call.1} parent=43 // pred_check_branch
          %296 = sbr.rel (%p294) target = $region56
        $region55: #{tpu_custom_call.1} parent=43 // pred_region
          %297 = dma.done [#allocation6], 16
        $region56: #{tpu_custom_call.1} parent=43 // pred_fallthru
          _
        // Predicated region
        $region57: #{tpu_custom_call.1} parent=43 // pred_check
          %p298 = pneg %p110
        $region58: #{tpu_custom_call.1} parent=43 // pred_check_branch
          %300 = sbr.rel (%p298) target = $region60
        $region59: #{tpu_custom_call.1} parent=43 // pred_region
          %301 = dma.done [#allocation9], 6144
        $region60: #{tpu_custom_call.1} parent=43 // pred_fallthru
          _
        // Predicated region
        $region61: #{tpu_custom_call.1} parent=43 // pred_check
          %p302 = pneg %p131
        $region62: #{tpu_custom_call.1} parent=43 // pred_check_branch
          %304 = sbr.rel (%p302) target = $region64
        $region63: #{tpu_custom_call.1} parent=43 // pred_region
          %305 = dma.done [#allocation9], 2048
        $region64: #{tpu_custom_call.1} parent=43 // pred_fallthru
          _
        // Predicated region
        $region65: #{tpu_custom_call.1} parent=43 // pred_check
          %p306 = pneg %p152
        $region66: #{tpu_custom_call.1} parent=43 // pred_check_branch
          %308 = sbr.rel (%p306) target = $region68
        $region67: #{tpu_custom_call.1} parent=43 // pred_region
          %309 = dma.done [#allocation12], 16
        $region68: #{tpu_custom_call.1} parent=43 // pred_fallthru
          _
        %s310 = sand.u32 %s34, 1
        %s311 = scalar_lea.sflag [#allocation3], %s310
        %s312 = sand.u32 %s34, 1
        %s313 = smul.addr %s312, 8
        %s314 = scalar_lea.vmem [#allocation2], %s313
        %p315 = pneg %p47
        %p316 = pneg %p44
        %p317 = pneg %p68
        %p318 = pneg %p65
        %p319 = pneg %p89
        %p320 = pneg %p86
        %p321 = pneg %p110
        %p322 = pneg %p107
        %p323 = pneg %p131
        %p324 = pneg %p128
        %p325 = pneg %p152
        %p326 = pneg %p149
        %p327 = pneg %p178
        %p328 = pneg %p175
        %s329 = sand.u32 %s165, 1
        %s330 = scalar_lea.sflag [#allocation4], %s329
        %s331 = sand.u32 %s165, 1
        %s332 = smul.addr %s331, 8
        %s333 = scalar_lea.vmem [#allocation13], %s332
        %v334 = vld [vmem:[%s285] sm:$0xff]
        %335 = vadd.xlane.f32.xlu0 %v334
        %v336 = vpop.xlane.xlu0 %335
        %v337 = vrcp.pop 128.0
        %v338 = vmul.f32 %v336, %v337
        %v339 = vsub.f32 %v334, %v338
        %v340 = vmul.f32 %v339, %v339
        %341 = vadd.xlane.f32.xlu0 %v340
        %v342 = vpop.xlane.xlu0 %341
        %v343 = vmul.f32 %v342, %v337
        %v344 = vadd.f32 %v343, 1e-05
        %v345 = vrsqrt.pop %v344
        %v346 = vmul.f32 %v339, %v345
        %v347 = vld [vmem:[#allocation5] sm:$0x1]
        %v349 = vlaneseq
        %v350 = vshrl.u32 %v349, 7
        %v351 = vsub.s32 0, %v350
        %v352 = vrot.slane %v347, %v351
        %v354 = vmul.f32 %v346, %v352
        %v355 = vld [vmem:[#allocation7] sm:$0x1]
        %v357 = vlaneseq
        %v358 = vshrl.u32 %v357, 7
        %v359 = vsub.s32 0, %v358
        %v360 = vrot.slane %v355, %v359
        %v362 = vadd.f32 %v354, %v360
        %v363 = vld [vmem:[#allocation8] sm:$0xff]
        %v364 = vld [vmem:[#allocation8 + $0x8] sm:$0xff]
        %v365 = vld [vmem:[#allocation8 + $0x10] sm:$0xff]
        %v366 = vld [vmem:[#allocation8 + $0x18] sm:$0xff]
        %v367 = vld [vmem:[#allocation8 + $0x20] sm:$0xff]
        %v368 = vld [vmem:[#allocation8 + $0x28] sm:$0xff]
        %v369 = vld [vmem:[#allocation8 + $0x30] sm:$0xff]
        %v370 = vld [vmem:[#allocation8 + $0x38] sm:$0xff]
        %v371 = vld [vmem:[#allocation8 + $0x40] sm:$0xff]
        %v372 = vld [vmem:[#allocation8 + $0x48] sm:$0xff]
        %v373 = vld [vmem:[#allocation8 + $0x50] sm:$0xff]
        %v374 = vld [vmem:[#allocation8 + $0x58] sm:$0xff]
        %v375 = vld [vmem:[#allocation8 + $0x60] sm:$0xff]
        %v376 = vld [vmem:[#allocation8 + $0x68] sm:$0xff]
        %v377 = vld [vmem:[#allocation8 + $0x70] sm:$0xff]
        %v378 = vld [vmem:[#allocation8 + $0x78] sm:$0xff]
        %v379 = vld [vmem:[#allocation8 + $0x80] sm:$0xff]
        %v380 = vld [vmem:[#allocation8 + $0x88] sm:$0xff]
        %v381 = vld [vmem:[#allocation8 + $0x90] sm:$0xff]
        %v382 = vld [vmem:[#allocation8 + $0x98] sm:$0xff]
        %v383 = vld [vmem:[#allocation8 + $0xa0] sm:$0xff]
        %v384 = vld [vmem:[#allocation8 + $0xa8] sm:$0xff]
        %v385 = vld [vmem:[#allocation8 + $0xb0] sm:$0xff]
        %v386 = vld [vmem:[#allocation8 + $0xb8] sm:$0xff]
        %v387 = vld [vmem:[#allocation8 + $0xc0] sm:$0xff]
        %v388 = vld [vmem:[#allocation8 + $0xc8] sm:$0xff]
        %v389 = vld [vmem:[#allocation8 + $0xd0] sm:$0xff]
        %v390 = vld [vmem:[#allocation8 + $0xd8] sm:$0xff]
        %v391 = vld [vmem:[#allocation8 + $0xe0] sm:$0xff]
        %v392 = vld [vmem:[#allocation8 + $0xe8] sm:$0xff]
        %v393 = vld [vmem:[#allocation8 + $0xf0] sm:$0xff]
        %v394 = vld [vmem:[#allocation8 + $0xf8] sm:$0xff]
        %v395 = vld [vmem:[#allocation8 + $0x100] sm:$0xff]
        %v396 = vld [vmem:[#allocation8 + $0x108] sm:$0xff]
        %v397 = vld [vmem:[#allocation8 + $0x110] sm:$0xff]
        %v398 = vld [vmem:[#allocation8 + $0x118] sm:$0xff]
        %v399 = vld [vmem:[#allocation8 + $0x120] sm:$0xff]
        %v400 = vld [vmem:[#allocation8 + $0x128] sm:$0xff]
        %v401 = vld [vmem:[#allocation8 + $0x130] sm:$0xff]
        %v402 = vld [vmem:[#allocation8 + $0x138] sm:$0xff]
        %v403 = vld [vmem:[#allocation8 + $0x140] sm:$0xff]
        %v404 = vld [vmem:[#allocation8 + $0x148] sm:$0xff]
        %v405 = vld [vmem:[#allocation8 + $0x150] sm:$0xff]
        %v406 = vld [vmem:[#allocation8 + $0x158] sm:$0xff]
        %v407 = vld [vmem:[#allocation8 + $0x160] sm:$0xff]
        %v408 = vld [vmem:[#allocation8 + $0x168] sm:$0xff]
        %v409 = vld [vmem:[#allocation8 + $0x170] sm:$0xff]
        %v410 = vld [vmem:[#allocation8 + $0x178] sm:$0xff]
        %411 = vmatprep.subr.mxu0 %v364
        %412 = vmatpush1.msra.mxu0 %v363
        %413 = vmatprep.subr.mxu0 %v367
        %414 = vmatpush1.msra.mxu0 %v366
        %415 = vmatprep.subr.mxu0 %v370
        %416 = vmatpush1.msra.mxu0 %v369
        %417 = vmatprep.subr.mxu0 %v373
        %418 = vmatpush1.msra.mxu0 %v372
        %419 = vmatprep.subr.mxu0 %v376
        %420 = vmatpush1.msra.mxu0 %v375
        %421 = vmatprep.subr.mxu0 %v379
        %422 = vmatpush1.msra.mxu0 %v378
        %423 = vmatprep.subr.mxu0 %v382
        %424 = vmatpush1.msra.mxu0 %v381
        %425 = vmatprep.subr.mxu0 %v385
        %426 = vmatpush1.msra.mxu0 %v384
        %427 = vmatprep.subr.mxu0 %v388
        %428 = vmatpush1.msra.mxu0 %v387
        %429 = vmatprep.subr.mxu0 %v391
        %430 = vmatpush1.msra.mxu0 %v390
        %431 = vmatprep.subr.mxu0 %v394
        %432 = vmatpush1.msra.mxu0 %v393
        %433 = vmatprep.subr.mxu0 %v397
        %434 = vmatpush1.msra.mxu0 %v396
        %435 = vmatprep.subr.mxu0 %v400
        %436 = vmatpush1.msra.mxu0 %v399
        %437 = vmatprep.subr.mxu0 %v403
        %438 = vmatpush1.msra.mxu0 %v402
        %439 = vmatprep.subr.mxu0 %v406
        %440 = vmatpush1.msra.mxu0 %v405
        %441 = vmatprep.subr.mxu0 %v409
        %442 = vmatpush1.msra.mxu0 %v408
        %443 = vmatprep.subr.mxu0 0.0
        %444 = vmatpush1.msra.mxu0 0.0
        %445 = vmatprep.subr.mxu0 0.0
        %446 = vmatpush1.msra.mxu0 0.0
        %447 = vmatprep.subr.mxu0 0.0
        %448 = vmatpush1.msra.mxu0 0.0
        %449 = vmatprep.subr.mxu0 0.0
        %450 = vmatpush1.msra.mxu0 0.0
        %451 = vmatprep.subr.mxu0 0.0
        %452 = vmatpush1.msra.mxu0 0.0
        %453 = vmatprep.subr.mxu0 0.0
        %454 = vmatpush1.msra.mxu0 0.0
        %455 = vmatprep.subr.mxu0 0.0
        %456 = vmatpush1.msra.mxu0 0.0
        %457 = vmatprep.subr.mxu0 0.0
        %458 = vmatpush1.msra.mxu0 0.0
        %459 = vmatprep.subr.mxu0 0.0
        %460 = vmatpush1.msra.mxu0 0.0
        %461 = vmatprep.subr.mxu0 0.0
        %462 = vmatpush1.msra.mxu0 0.0
        %463 = vmatprep.subr.mxu0 0.0
        %464 = vmatpush1.msra.mxu0 0.0
        %465 = vmatprep.subr.mxu0 0.0
        %466 = vmatpush1.msra.mxu0 0.0
        %467 = vmatprep.subr.mxu0 0.0
        %468 = vmatpush1.msra.mxu0 0.0
        %469 = vmatprep.subr.mxu0 0.0
        %470 = vmatpush1.msra.mxu0 0.0
        %471 = vmatprep.subr.mxu0 0.0
        %472 = vmatpush1.msra.mxu0 0.0
        %473 = vmatprep.subr.mxu0 0.0
        %474 = vmatpush1.msra.mxu0 0.0
        %475 = vmatprep.mubr.f32.mxu0 0.0
        %476 = vmatmul.mubr.f32.gmra.mrb[0].mxu0 %v362
        %v477 = vpop.f32.mrb[0].mxu0
        %v478 = vadd.f32 0.0, %v477
        %v479 = vpop.f32.mrb[0].mxu0
        %v480 = vadd.f32 0.0, %v479
        %481 = vdwg.mxu0
        %482 = vmatprep.subr.mxu0 0.0
        %483 = vmatpush1.msra.mxu0 %v365
        %484 = vmatprep.subr.mxu0 0.0
        %485 = vmatpush1.msra.mxu0 %v368
        %486 = vmatprep.subr.mxu0 0.0
        %487 = vmatpush1.msra.mxu0 %v371
        %488 = vmatprep.subr.mxu0 0.0
        %489 = vmatpush1.msra.mxu0 %v374
        %490 = vmatprep.subr.mxu0 0.0
        %491 = vmatpush1.msra.mxu0 %v377
        %492 = vmatprep.subr.mxu0 0.0
        %493 = vmatpush1.msra.mxu0 %v380
        %494 = vmatprep.subr.mxu0 0.0
        %495 = vmatpush1.msra.mxu0 %v383
        %496 = vmatprep.subr.mxu0 0.0
        %497 = vmatpush1.msra.mxu0 %v386
        %498 = vmatprep.subr.mxu0 0.0
        %499 = vmatpush1.msra.mxu0 %v389
        %500 = vmatprep.subr.mxu0 0.0
        %501 = vmatpush1.msra.mxu0 %v392
        %502 = vmatprep.subr.mxu0 0.0
        %503 = vmatpush1.msra.mxu0 %v395
        %504 = vmatprep.subr.mxu0 0.0
        %505 = vmatpush1.msra.mxu0 %v398
        %506 = vmatprep.subr.mxu0 0.0
        %507 = vmatpush1.msra.mxu0 %v401
        %508 = vmatprep.subr.mxu0 0.0
        %509 = vmatpush1.msra.mxu0 %v404
        %510 = vmatprep.subr.mxu0 0.0
        %511 = vmatpush1.msra.mxu0 %v407
        %512 = vmatprep.subr.mxu0 0.0
        %513 = vmatpush1.msra.mxu0 %v410
        %514 = vmatprep.subr.mxu0 0.0
        %515 = vmatpush1.msra.mxu0 0.0
        %516 = vmatprep.subr.mxu0 0.0
        %517 = vmatpush1.msra.mxu0 0.0
        %518 = vmatprep.subr.mxu0 0.0
        %519 = vmatpush1.msra.mxu0 0.0
        %520 = vmatprep.subr.mxu0 0.0
        %521 = vmatpush1.msra.mxu0 0.0
        %522 = vmatprep.subr.mxu0 0.0
        %523 = vmatpush1.msra.mxu0 0.0
        %524 = vmatprep.subr.mxu0 0.0
        %525 = vmatpush1.msra.mxu0 0.0
        %526 = vmatprep.subr.mxu0 0.0
        %527 = vmatpush1.msra.mxu0 0.0
        %528 = vmatprep.subr.mxu0 0.0
        %529 = vmatpush1.msra.mxu0 0.0
        %530 = vmatprep.subr.mxu0 0.0
        %531 = vmatpush1.msra.mxu0 0.0
        %532 = vmatprep.subr.mxu0 0.0
        %533 = vmatpush1.msra.mxu0 0.0
        %534 = vmatprep.subr.mxu0 0.0
        %535 = vmatpush1.msra.mxu0 0.0
        %536 = vmatprep.subr.mxu0 0.0
        %537 = vmatpush1.msra.mxu0 0.0
        %538 = vmatprep.subr.mxu0 0.0
        %539 = vmatpush1.msra.mxu0 0.0
        %540 = vmatprep.subr.mxu0 0.0
        %541 = vmatpush1.msra.mxu0 0.0
        %542 = vmatprep.subr.mxu0 0.0
        %543 = vmatpush1.msra.mxu0 0.0
        %544 = vmatprep.subr.mxu0 0.0
        %545 = vmatpush1.msra.mxu0 0.0
        %546 = vmatprep.mubr.f32.mxu0 0.0
        %547 = vmatmul.mubr.f32.gmra.mrb[0].mxu0 %v362
        %v548 = vpop.f32.mrb[0].mxu0
        %v549 = vadd.f32 0.0, %v548
        %v550 = vpop.f32.mrb[0].mxu0
        %551 = vdwg.mxu0
        %vm552 = vcmask 261120
        %v554 = vsel %vm552, %v478, 0
        %v557 = vsel %vm552, %v480, 0
        %559 = vmatprep.subr.mxu0 0.0
        %560 = vmatpush1.xpose.msra.mxu0 %v557
        %561 = vmatprep.subr.mxu0 0.0
        %562 = vmatpush1.xpose.msra.mxu0 0.0
        %563 = vmatprep.subr.mxu0 0.0
        %564 = vmatpush1.xpose.msra.mxu0 0.0
        %565 = vmatprep.subr.mxu0 0.0
        %566 = vmatpush1.xpose.msra.mxu0 0.0
        %567 = vmatprep.subr.mxu0 0.0
        %568 = vmatpush1.xpose.msra.mxu0 0.0
        %569 = vmatprep.subr.mxu0 0.0
        %570 = vmatpush1.xpose.msra.mxu0 0.0
        %571 = vmatprep.subr.mxu0 0.0
        %572 = vmatpush1.xpose.msra.mxu0 0.0
        %573 = vmatprep.subr.mxu0 0.0
        %574 = vmatpush1.xpose.msra.mxu0 0.0
        %575 = vmatprep.subr.mxu0 0.0
        %576 = vmatpush1.xpose.msra.mxu0 0.0
        %577 = vmatprep.subr.mxu0 0.0
        %578 = vmatpush1.xpose.msra.mxu0 0.0
        %579 = vmatprep.subr.mxu0 0.0
        %580 = vmatpush1.xpose.msra.mxu0 0.0
        %581 = vmatprep.subr.mxu0 0.0
        %582 = vmatpush1.xpose.msra.mxu0 0.0
        %583 = vmatprep.subr.mxu0 0.0
        %584 = vmatpush1.xpose.msra.mxu0 0.0
        %585 = vmatprep.subr.mxu0 0.0
        %586 = vmatpush1.xpose.msra.mxu0 0.0
        %587 = vmatprep.subr.mxu0 0.0
        %588 = vmatpush1.xpose.msra.mxu0 0.0
        %589 = vmatprep.subr.mxu0 0.0
        %590 = vmatpush1.xpose.msra.mxu0 0.0
        %591 = vmatprep.subr.mxu0 0.0
        %592 = vmatpush1.xpose.msra.mxu0 0.0
        %593 = vmatprep.subr.mxu0 0.0
        %594 = vmatpush1.xpose.msra.mxu0 0.0
        %595 = vmatprep.subr.mxu0 0.0
        %596 = vmatpush1.xpose.msra.mxu0 0.0
        %597 = vmatprep.subr.mxu0 0.0
        %598 = vmatpush1.xpose.msra.mxu0 0.0
        %599 = vmatprep.subr.mxu0 0.0
        %600 = vmatpush1.xpose.msra.mxu0 0.0
        %601 = vmatprep.subr.mxu0 0.0
        %602 = vmatpush1.xpose.msra.mxu0 0.0
        %603 = vmatprep.subr.mxu0 0.0
        %604 = vmatpush1.xpose.msra.mxu0 0.0
        %605 = vmatprep.subr.mxu0 0.0
        %606 = vmatpush1.xpose.msra.mxu0 0.0
        %607 = vmatprep.subr.mxu0 0.0
        %608 = vmatpush1.xpose.msra.mxu0 0.0
        %609 = vmatprep.subr.mxu0 0.0
        %610 = vmatpush1.xpose.msra.mxu0 0.0
        %611 = vmatprep.subr.mxu0 0.0
        %612 = vmatpush1.xpose.msra.mxu0 0.0
        %613 = vmatprep.subr.mxu0 0.0
        %614 = vmatpush1.xpose.msra.mxu0 0.0
        %615 = vmatprep.subr.mxu0 0.0
        %616 = vmatpush1.xpose.msra.mxu0 0.0
        %617 = vmatprep.subr.mxu0 0.0
        %618 = vmatpush1.xpose.msra.mxu0 0.0
        %619 = vmatprep.subr.mxu0 0.0
        %620 = vmatpush1.xpose.msra.mxu0 0.0
        %621 = vmatprep.subr.mxu0 0.0
        %622 = vmatpush1.xpose.msra.mxu0 0.0
        %623 = vmatprep.mubr.f32.mxu0 0.0
        %624 = vmatmul.mubr.f32.gmra.mrb[0].mxu0 %v554
        %v625 = vpop.f32.mrb[0].mxu0
        %v626 = vadd.f32 0.0, %v625
        %v627 = vpop.f32.mrb[0].mxu0
        %628 = vdwg.mxu0
        %v629 = vmul.f32 %v626, 0.17677669
        %vm630 = vcmask 64512
        %v631 = vsel %vm630, %v629, -inf
        %632 = vmax.xlane.f32.xlu0 %v631
        %v633 = vpop.xlane.xlu0 %632
        %v634 = vsub.f32 %v629, %v633
        %v635 = vmul.f32 %v634, 1.442695
        %v636 = vpow.pop %v635
        %v637 = vsel %vm630, %v636, 0.0
        %638 = vadd.xlane.f32.xlu0 %v637
        %v639 = vpop.xlane.xlu0 %638
        %v640 = vrcp.pop %v639
        %v641 = vmul.f32 %v636, %v640
        %v643 = vsel %vm630, %v641, 0
        %645 = vmatprep.subr.mxu0 0.0
        %646 = vmatpush1.msra.mxu0 %v549
        %647 = vmatprep.subr.mxu0 0.0
        %648 = vmatpush1.msra.mxu0 0.0
        %649 = vmatprep.subr.mxu0 0.0
        %650 = vmatpush1.msra.mxu0 0.0
        %651 = vmatprep.subr.mxu0 0.0
        %652 = vmatpush1.msra.mxu0 0.0
        %653 = vmatprep.subr.mxu0 0.0
        %654 = vmatpush1.msra.mxu0 0.0
        %655 = vmatprep.subr.mxu0 0.0
        %656 = vmatpush1.msra.mxu0 0.0
        %657 = vmatprep.subr.mxu0 0.0
        %658 = vmatpush1.msra.mxu0 0.0
        %659 = vmatprep.subr.mxu0 0.0
        %660 = vmatpush1.msra.mxu0 0.0
        %661 = vmatprep.subr.mxu0 0.0
        %662 = vmatpush1.msra.mxu0 0.0
        %663 = vmatprep.subr.mxu0 0.0
        %664 = vmatpush1.msra.mxu0 0.0
        %665 = vmatprep.subr.mxu0 0.0
        %666 = vmatpush1.msra.mxu0 0.0
        %667 = vmatprep.subr.mxu0 0.0
        %668 = vmatpush1.msra.mxu0 0.0
        %669 = vmatprep.subr.mxu0 0.0
        %670 = vmatpush1.msra.mxu0 0.0
        %671 = vmatprep.subr.mxu0 0.0
        %672 = vmatpush1.msra.mxu0 0.0
        %673 = vmatprep.subr.mxu0 0.0
        %674 = vmatpush1.msra.mxu0 0.0
        %675 = vmatprep.subr.mxu0 0.0
        %676 = vmatpush1.msra.mxu0 0.0
        %677 = vmatprep.subr.mxu0 0.0
        %678 = vmatpush1.msra.mxu0 0.0
        %679 = vmatprep.subr.mxu0 0.0
        %680 = vmatpush1.msra.mxu0 0.0
        %681 = vmatprep.subr.mxu0 0.0
        %682 = vmatpush1.msra.mxu0 0.0
        %683 = vmatprep.subr.mxu0 0.0
        %684 = vmatpush1.msra.mxu0 0.0
        %685 = vmatprep.subr.mxu0 0.0
        %686 = vmatpush1.msra.mxu0 0.0
        %687 = vmatprep.subr.mxu0 0.0
        %688 = vmatpush1.msra.mxu0 0.0
        %689 = vmatprep.subr.mxu0 0.0
        %690 = vmatpush1.msra.mxu0 0.0
        %691 = vmatprep.subr.mxu0 0.0
        %692 = vmatpush1.msra.mxu0 0.0
        %693 = vmatprep.subr.mxu0 0.0
        %694 = vmatpush1.msra.mxu0 0.0
        %695 = vmatprep.subr.mxu0 0.0
        %696 = vmatpush1.msra.mxu0 0.0
        %697 = vmatprep.subr.mxu0 0.0
        %698 = vmatpush1.msra.mxu0 0.0
        %699 = vmatprep.subr.mxu0 0.0
        %700 = vmatpush1.msra.mxu0 0.0
        %701 = vmatprep.subr.mxu0 0.0
        %702 = vmatpush1.msra.mxu0 0.0
        %703 = vmatprep.subr.mxu0 0.0
        %704 = vmatpush1.msra.mxu0 0.0
        %705 = vmatprep.subr.mxu0 0.0
        %706 = vmatpush1.msra.mxu0 0.0
        %707 = vmatprep.subr.mxu0 0.0
        %708 = vmatpush1.msra.mxu0 0.0
        %709 = vmatprep.mubr.f32.mxu0 0.0
        %710 = vmatmul.mubr.f32.gmra.mrb[0].mxu0 %v643
        %v711 = vpop.f32.mrb[0].mxu0
        %v712 = vadd.f32 0.0, %v711
        %v713 = vpop.f32.mrb[0].mxu0
        %714 = vdwg.mxu0
        %715 = vrot.lane.b32.xlu0 %v478, 96
        %v716 = vpop.permute.xlu0 %715
        %717 = vrot.lane.b32.xlu0 %v480, 96
        %v718 = vpop.permute.xlu0 %717
        %v719 = vsel %vm552, %v716, 0
        %v721 = vsel %vm552, %v718, 0
        %723 = vmatprep.subr.mxu0 0.0
        %724 = vmatpush1.xpose.msra.mxu0 %v721
        %725 = vmatprep.subr.mxu0 0.0
        %726 = vmatpush1.xpose.msra.mxu0 0.0
        %727 = vmatprep.subr.mxu0 0.0
        %728 = vmatpush1.xpose.msra.mxu0 0.0
        %729 = vmatprep.subr.mxu0 0.0
        %730 = vmatpush1.xpose.msra.mxu0 0.0
        %731 = vmatprep.subr.mxu0 0.0
        %732 = vmatpush1.xpose.msra.mxu0 0.0
        %733 = vmatprep.subr.mxu0 0.0
        %734 = vmatpush1.xpose.msra.mxu0 0.0
        %735 = vmatprep.subr.mxu0 0.0
        %736 = vmatpush1.xpose.msra.mxu0 0.0
        %737 = vmatprep.subr.mxu0 0.0
        %738 = vmatpush1.xpose.msra.mxu0 0.0
        %739 = vmatprep.subr.mxu0 0.0
        %740 = vmatpush1.xpose.msra.mxu0 0.0
        %741 = vmatprep.subr.mxu0 0.0
        %742 = vmatpush1.xpose.msra.mxu0 0.0
        %743 = vmatprep.subr.mxu0 0.0
        %744 = vmatpush1.xpose.msra.mxu0 0.0
        %745 = vmatprep.subr.mxu0 0.0
        %746 = vmatpush1.xpose.msra.mxu0 0.0
        %747 = vmatprep.subr.mxu0 0.0
        %748 = vmatpush1.xpose.msra.mxu0 0.0
        %749 = vmatprep.subr.mxu0 0.0
        %750 = vmatpush1.xpose.msra.mxu0 0.0
        %751 = vmatprep.subr.mxu0 0.0
        %752 = vmatpush1.xpose.msra.mxu0 0.0
        %753 = vmatprep.subr.mxu0 0.0
        %754 = vmatpush1.xpose.msra.mxu0 0.0
        %755 = vmatprep.subr.mxu0 0.0
        %756 = vmatpush1.xpose.msra.mxu0 0.0
        %757 = vmatprep.subr.mxu0 0.0
        %758 = vmatpush1.xpose.msra.mxu0 0.0
        %759 = vmatprep.subr.mxu0 0.0
        %760 = vmatpush1.xpose.msra.mxu0 0.0
        %761 = vmatprep.subr.mxu0 0.0
        %762 = vmatpush1.xpose.msra.mxu0 0.0
        %763 = vmatprep.subr.mxu0 0.0
        %764 = vmatpush1.xpose.msra.mxu0 0.0
        %765 = vmatprep.subr.mxu0 0.0
        %766 = vmatpush1.xpose.msra.mxu0 0.0
        %767 = vmatprep.subr.mxu0 0.0
        %768 = vmatpush1.xpose.msra.mxu0 0.0
        %769 = vmatprep.subr.mxu0 0.0
        %770 = vmatpush1.xpose.msra.mxu0 0.0
        %771 = vmatprep.subr.mxu0 0.0
        %772 = vmatpush1.xpose.msra.mxu0 0.0
        %773 = vmatprep.subr.mxu0 0.0
        %774 = vmatpush1.xpose.msra.mxu0 0.0
        %775 = vmatprep.subr.mxu0 0.0
        %776 = vmatpush1.xpose.msra.mxu0 0.0
        %777 = vmatprep.subr.mxu0 0.0
        %778 = vmatpush1.xpose.msra.mxu0 0.0
        %779 = vmatprep.subr.mxu0 0.0
        %780 = vmatpush1.xpose.msra.mxu0 0.0
        %781 = vmatprep.subr.mxu0 0.0
        %782 = vmatpush1.xpose.msra.mxu0 0.0
        %783 = vmatprep.subr.mxu0 0.0
        %784 = vmatpush1.xpose.msra.mxu0 0.0
        %785 = vmatprep.subr.mxu0 0.0
        %786 = vmatpush1.xpose.msra.mxu0 0.0
        %787 = vmatprep.mubr.f32.mxu0 0.0
        %788 = vmatmul.mubr.f32.gmra.mrb[0].mxu0 %v719
        %v789 = vpop.f32.mrb[0].mxu0
        %v790 = vadd.f32 0.0, %v789
        %v791 = vpop.f32.mrb[0].mxu0
        %792 = vdwg.mxu0
        %v793 = vmul.f32 %v790, 0.17677669
        %v794 = vsel %vm630, %v793, -inf
        %795 = vmax.xlane.f32.xlu0 %v794
        %v796 = vpop.xlane.xlu0 %795
        %v797 = vsub.f32 %v793, %v796
        %v798 = vmul.f32 %v797, 1.442695
        %v799 = vpow.pop %v798
        %v800 = vsel %vm630, %v799, 0.0
        %801 = vadd.xlane.f32.xlu0 %v800
        %v802 = vpop.xlane.xlu0 %801
        %v803 = vrcp.pop %v802
        %v804 = vmul.f32 %v799, %v803
        %806 = vrot.lane.b32.xlu0 %v549, 96
        %v807 = vpop.permute.xlu0 %806
        %v810 = vsel %vm630, %v804, 0
        %812 = vmatprep.subr.mxu0 0.0
        %813 = vmatpush1.msra.mxu0 %v807
        %814 = vmatprep.subr.mxu0 0.0
        %815 = vmatpush1.msra.mxu0 0.0
        %816 = vmatprep.subr.mxu0 0.0
        %817 = vmatpush1.msra.mxu0 0.0
        %818 = vmatprep.subr.mxu0 0.0
        %819 = vmatpush1.msra.mxu0 0.0
        %820 = vmatprep.subr.mxu0 0.0
        %821 = vmatpush1.msra.mxu0 0.0
        %822 = vmatprep.subr.mxu0 0.0
        %823 = vmatpush1.msra.mxu0 0.0
        %824 = vmatprep.subr.mxu0 0.0
        %825 = vmatpush1.msra.mxu0 0.0
        %826 = vmatprep.subr.mxu0 0.0
        %827 = vmatpush1.msra.mxu0 0.0
        %828 = vmatprep.subr.mxu0 0.0
        %829 = vmatpush1.msra.mxu0 0.0
        %830 = vmatprep.subr.mxu0 0.0
        %831 = vmatpush1.msra.mxu0 0.0
        %832 = vmatprep.subr.mxu0 0.0
        %833 = vmatpush1.msra.mxu0 0.0
        %834 = vmatprep.subr.mxu0 0.0
        %835 = vmatpush1.msra.mxu0 0.0
        %836 = vmatprep.subr.mxu0 0.0
        %837 = vmatpush1.msra.mxu0 0.0
        %838 = vmatprep.subr.mxu0 0.0
        %839 = vmatpush1.msra.mxu0 0.0
        %840 = vmatprep.subr.mxu0 0.0
        %841 = vmatpush1.msra.mxu0 0.0
        %842 = vmatprep.subr.mxu0 0.0
        %843 = vmatpush1.msra.mxu0 0.0
        %844 = vmatprep.subr.mxu0 0.0
        %845 = vmatpush1.msra.mxu0 0.0
        %846 = vmatprep.subr.mxu0 0.0
        %847 = vmatpush1.msra.mxu0 0.0
        %848 = vmatprep.subr.mxu0 0.0
        %849 = vmatpush1.msra.mxu0 0.0
        %850 = vmatprep.subr.mxu0 0.0
        %851 = vmatpush1.msra.mxu0 0.0
        %852 = vmatprep.subr.mxu0 0.0
        %853 = vmatpush1.msra.mxu0 0.0
        %854 = vmatprep.subr.mxu0 0.0
        %855 = vmatpush1.msra.mxu0 0.0
        %856 = vmatprep.subr.mxu0 0.0
        %857 = vmatpush1.msra.mxu0 0.0
        %858 = vmatprep.subr.mxu0 0.0
        %859 = vmatpush1.msra.mxu0 0.0
        %860 = vmatprep.subr.mxu0 0.0
        %861 = vmatpush1.msra.mxu0 0.0
        %862 = vmatprep.subr.mxu0 0.0
        %863 = vmatpush1.msra.mxu0 0.0
        %864 = vmatprep.subr.mxu0 0.0
        %865 = vmatpush1.msra.mxu0 0.0
        %866 = vmatprep.subr.mxu0 0.0
        %867 = vmatpush1.msra.mxu0 0.0
        %868 = vmatprep.subr.mxu0 0.0
        %869 = vmatpush1.msra.mxu0 0.0
        %870 = vmatprep.subr.mxu0 0.0
        %871 = vmatpush1.msra.mxu0 0.0
        %872 = vmatprep.subr.mxu0 0.0
        %873 = vmatpush1.msra.mxu0 0.0
        %874 = vmatprep.subr.mxu0 0.0
        %875 = vmatpush1.msra.mxu0 0.0
        %876 = vmatprep.mubr.f32.mxu0 0.0
        %877 = vmatmul.mubr.f32.gmra.mrb[0].mxu0 %v810
        %v878 = vpop.f32.mrb[0].mxu0
        %v879 = vadd.f32 0.0, %v878
        %v880 = vpop.f32.mrb[0].mxu0
        %881 = vdwg.mxu0
        %882 = vrot.lane.b32.xlu0 %v478, 64
        %v883 = vpop.permute.xlu0 %882
        %884 = vrot.lane.b32.xlu0 %v480, 64
        %v885 = vpop.permute.xlu0 %884
        %v886 = vsel %vm552, %v883, 0
        %v888 = vsel %vm552, %v885, 0
        %890 = vmatprep.subr.mxu0 0.0
        %891 = vmatpush1.xpose.msra.mxu0 %v888
        %892 = vmatprep.subr.mxu0 0.0
        %893 = vmatpush1.xpose.msra.mxu0 0.0
        %894 = vmatprep.subr.mxu0 0.0
        %895 = vmatpush1.xpose.msra.mxu0 0.0
        %896 = vmatprep.subr.mxu0 0.0
        %897 = vmatpush1.xpose.msra.mxu0 0.0
        %898 = vmatprep.subr.mxu0 0.0
        %899 = vmatpush1.xpose.msra.mxu0 0.0
        %900 = vmatprep.subr.mxu0 0.0
        %901 = vmatpush1.xpose.msra.mxu0 0.0
        %902 = vmatprep.subr.mxu0 0.0
        %903 = vmatpush1.xpose.msra.mxu0 0.0
        %904 = vmatprep.subr.mxu0 0.0
        %905 = vmatpush1.xpose.msra.mxu0 0.0
        %906 = vmatprep.subr.mxu0 0.0
        %907 = vmatpush1.xpose.msra.mxu0 0.0
        %908 = vmatprep.subr.mxu0 0.0
        %909 = vmatpush1.xpose.msra.mxu0 0.0
        %910 = vmatprep.subr.mxu0 0.0
        %911 = vmatpush1.xpose.msra.mxu0 0.0
        %912 = vmatprep.subr.mxu0 0.0
        %913 = vmatpush1.xpose.msra.mxu0 0.0
        %914 = vmatprep.subr.mxu0 0.0
        %915 = vmatpush1.xpose.msra.mxu0 0.0
        %916 = vmatprep.subr.mxu0 0.0
        %917 = vmatpush1.xpose.msra.mxu0 0.0
        %918 = vmatprep.subr.mxu0 0.0
        %919 = vmatpush1.xpose.msra.mxu0 0.0
        %920 = vmatprep.subr.mxu0 0.0
        %921 = vmatpush1.xpose.msra.mxu0 0.0
        %922 = vmatprep.subr.mxu0 0.0
        %923 = vmatpush1.xpose.msra.mxu0 0.0
        %924 = vmatprep.subr.mxu0 0.0
        %925 = vmatpush1.xpose.msra.mxu0 0.0
        %926 = vmatprep.subr.mxu0 0.0
        %927 = vmatpush1.xpose.msra.mxu0 0.0
        %928 = vmatprep.subr.mxu0 0.0
        %929 = vmatpush1.xpose.msra.mxu0 0.0
        %930 = vmatprep.subr.mxu0 0.0
        %931 = vmatpush1.xpose.msra.mxu0 0.0
        %932 = vmatprep.subr.mxu0 0.0
        %933 = vmatpush1.xpose.msra.mxu0 0.0
        %934 = vmatprep.subr.mxu0 0.0
        %935 = vmatpush1.xpose.msra.mxu0 0.0
        %936 = vmatprep.subr.mxu0 0.0
        %937 = vmatpush1.xpose.msra.mxu0 0.0
        %938 = vmatprep.subr.mxu0 0.0
        %939 = vmatpush1.xpose.msra.mxu0 0.0
        %940 = vmatprep.subr.mxu0 0.0
        %941 = vmatpush1.xpose.msra.mxu0 0.0
        %942 = vmatprep.subr.mxu0 0.0
        %943 = vmatpush1.xpose.msra.mxu0 0.0
        %944 = vmatprep.subr.mxu0 0.0
        %945 = vmatpush1.xpose.msra.mxu0 0.0
        %946 = vmatprep.subr.mxu0 0.0
        %947 = vmatpush1.xpose.msra.mxu0 0.0
        %948 = vmatprep.subr.mxu0 0.0
        %949 = vmatpush1.xpose.msra.mxu0 0.0
        %950 = vmatprep.subr.mxu0 0.0
        %951 = vmatpush1.xpose.msra.mxu0 0.0
        %952 = vmatprep.subr.mxu0 0.0
        %953 = vmatpush1.xpose.msra.mxu0 0.0
        %954 = vmatprep.mubr.f32.mxu0 0.0
        %955 = vmatmul.mubr.f32.gmra.mrb[0].mxu0 %v886
        %v956 = vpop.f32.mrb[0].mxu0
        %v957 = vadd.f32 0.0, %v956
        %v958 = vpop.f32.mrb[0].mxu0
        %959 = vdwg.mxu0
        %v960 = vmul.f32 %v957, 0.17677669
        %v961 = vsel %vm630, %v960, -inf
        %962 = vmax.xlane.f32.xlu0 %v961
        %v963 = vpop.xlane.xlu0 %962
        %v964 = vsub.f32 %v960, %v963
        %v965 = vmul.f32 %v964, 1.442695
        %v966 = vpow.pop %v965
        %v967 = vsel %vm630, %v966, 0.0
        %968 = vadd.xlane.f32.xlu0 %v967
        %v969 = vpop.xlane.xlu0 %968
        %v970 = vrcp.pop %v969
        %v971 = vmul.f32 %v966, %v970
        %972 = vrot.lane.b32.xlu0 %v549, 64
        %v973 = vpop.permute.xlu0 %972
        %v976 = vsel %vm630, %v971, 0
        %978 = vmatprep.subr.mxu0 0.0
        %979 = vmatpush1.msra.mxu0 %v973
        %980 = vmatprep.subr.mxu0 0.0
        %981 = vmatpush1.msra.mxu0 0.0
        %982 = vmatprep.subr.mxu0 0.0
        %983 = vmatpush1.msra.mxu0 0.0
        %984 = vmatprep.subr.mxu0 0.0
        %985 = vmatpush1.msra.mxu0 0.0
        %986 = vmatprep.subr.mxu0 0.0
        %987 = vmatpush1.msra.mxu0 0.0
        %988 = vmatprep.subr.mxu0 0.0
        %989 = vmatpush1.msra.mxu0 0.0
        %990 = vmatprep.subr.mxu0 0.0
        %991 = vmatpush1.msra.mxu0 0.0
        %992 = vmatprep.subr.mxu0 0.0
        %993 = vmatpush1.msra.mxu0 0.0
        %994 = vmatprep.subr.mxu0 0.0
        %995 = vmatpush1.msra.mxu0 0.0
        %996 = vmatprep.subr.mxu0 0.0
        %997 = vmatpush1.msra.mxu0 0.0
        %998 = vmatprep.subr.mxu0 0.0
        %999 = vmatpush1.msra.mxu0 0.0
        %1000 = vmatprep.subr.mxu0 0.0
        %1001 = vmatpush1.msra.mxu0 0.0
        %1002 = vmatprep.subr.mxu0 0.0
        %1003 = vmatpush1.msra.mxu0 0.0
        %1004 = vmatprep.subr.mxu0 0.0
        %1005 = vmatpush1.msra.mxu0 0.0
        %1006 = vmatprep.subr.mxu0 0.0
        %1007 = vmatpush1.msra.mxu0 0.0
        %1008 = vmatprep.subr.mxu0 0.0
        %1009 = vmatpush1.msra.mxu0 0.0
        %1010 = vmatprep.subr.mxu0 0.0
        %1011 = vmatpush1.msra.mxu0 0.0
        %1012 = vmatprep.subr.mxu0 0.0
        %1013 = vmatpush1.msra.mxu0 0.0
        %1014 = vmatprep.subr.mxu0 0.0
        %1015 = vmatpush1.msra.mxu0 0.0
        %1016 = vmatprep.subr.mxu0 0.0
        %1017 = vmatpush1.msra.mxu0 0.0
        %1018 = vmatprep.subr.mxu0 0.0
        %1019 = vmatpush1.msra.mxu0 0.0
        %1020 = vmatprep.subr.mxu0 0.0
        %1021 = vmatpush1.msra.mxu0 0.0
        %1022 = vmatprep.subr.mxu0 0.0
        %1023 = vmatpush1.msra.mxu0 0.0
        %1024 = vmatprep.subr.mxu0 0.0
        %1025 = vmatpush1.msra.mxu0 0.0
        %1026 = vmatprep.subr.mxu0 0.0
        %1027 = vmatpush1.msra.mxu0 0.0
        %1028 = vmatprep.subr.mxu0 0.0
        %1029 = vmatpush1.msra.mxu0 0.0
        %1030 = vmatprep.subr.mxu0 0.0
        %1031 = vmatpush1.msra.mxu0 0.0
        %1032 = vmatprep.subr.mxu0 0.0
        %1033 = vmatpush1.msra.mxu0 0.0
        %1034 = vmatprep.subr.mxu0 0.0
        %1035 = vmatpush1.msra.mxu0 0.0
        %1036 = vmatprep.subr.mxu0 0.0
        %1037 = vmatpush1.msra.mxu0 0.0
        %1038 = vmatprep.subr.mxu0 0.0
        %1039 = vmatpush1.msra.mxu0 0.0
        %1040 = vmatprep.subr.mxu0 0.0
        %1041 = vmatpush1.msra.mxu0 0.0
        %1042 = vmatprep.mubr.f32.mxu0 0.0
        %1043 = vmatmul.mubr.f32.gmra.mrb[0].mxu0 %v976
        %v1044 = vpop.f32.mrb[0].mxu0
        %v1045 = vadd.f32 0.0, %v1044
        %v1046 = vpop.f32.mrb[0].mxu0
        %1047 = vdwg.mxu0
        %1048 = vrot.lane.b32.xlu0 %v478, 32
        %v1049 = vpop.permute.xlu0 %1048
        %1050 = vrot.lane.b32.xlu0 %v480, 32
        %v1051 = vpop.permute.xlu0 %1050
        %v1052 = vsel %vm552, %v1049, 0
        %v1054 = vsel %vm552, %v1051, 0
        %1056 = vmatprep.subr.mxu0 0.0
        %1057 = vmatpush1.xpose.msra.mxu0 %v1054
        %1058 = vmatprep.subr.mxu0 0.0
        %1059 = vmatpush1.xpose.msra.mxu0 0.0
        %1060 = vmatprep.subr.mxu0 0.0
        %1061 = vmatpush1.xpose.msra.mxu0 0.0
        %1062 = vmatprep.subr.mxu0 0.0
        %1063 = vmatpush1.xpose.msra.mxu0 0.0
        %1064 = vmatprep.subr.mxu0 0.0
        %1065 = vmatpush1.xpose.msra.mxu0 0.0
        %1066 = vmatprep.subr.mxu0 0.0
        %1067 = vmatpush1.xpose.msra.mxu0 0.0
        %1068 = vmatprep.subr.mxu0 0.0
        %1069 = vmatpush1.xpose.msra.mxu0 0.0
        %1070 = vmatprep.subr.mxu0 0.0
        %1071 = vmatpush1.xpose.msra.mxu0 0.0
        %1072 = vmatprep.subr.mxu0 0.0
        %1073 = vmatpush1.xpose.msra.mxu0 0.0
        %1074 = vmatprep.subr.mxu0 0.0
        %1075 = vmatpush1.xpose.msra.mxu0 0.0
        %1076 = vmatprep.subr.mxu0 0.0
        %1077 = vmatpush1.xpose.msra.mxu0 0.0
        %1078 = vmatprep.subr.mxu0 0.0
        %1079 = vmatpush1.xpose.msra.mxu0 0.0
        %1080 = vmatprep.subr.mxu0 0.0
        %1081 = vmatpush1.xpose.msra.mxu0 0.0
        %1082 = vmatprep.subr.mxu0 0.0
        %1083 = vmatpush1.xpose.msra.mxu0 0.0
        %1084 = vmatprep.subr.mxu0 0.0
        %1085 = vmatpush1.xpose.msra.mxu0 0.0
        %1086 = vmatprep.subr.mxu0 0.0
        %1087 = vmatpush1.xpose.msra.mxu0 0.0
        %1088 = vmatprep.subr.mxu0 0.0
        %1089 = vmatpush1.xpose.msra.mxu0 0.0
        %1090 = vmatprep.subr.mxu0 0.0
        %1091 = vmatpush1.xpose.msra.mxu0 0.0
        %1092 = vmatprep.subr.mxu0 0.0
        %1093 = vmatpush1.xpose.msra.mxu0 0.0
        %1094 = vmatprep.subr.mxu0 0.0
        %1095 = vmatpush1.xpose.msra.mxu0 0.0
        %1096 = vmatprep.subr.mxu0 0.0
        %1097 = vmatpush1.xpose.msra.mxu0 0.0
        %1098 = vmatprep.subr.mxu0 0.0
        %1099 = vmatpush1.xpose.msra.mxu0 0.0
        %1100 = vmatprep.subr.mxu0 0.0
        %1101 = vmatpush1.xpose.msra.mxu0 0.0
        %1102 = vmatprep.subr.mxu0 0.0
        %1103 = vmatpush1.xpose.msra.mxu0 0.0
        %1104 = vmatprep.subr.mxu0 0.0
        %1105 = vmatpush1.xpose.msra.mxu0 0.0
        %1106 = vmatprep.subr.mxu0 0.0
        %1107 = vmatpush1.xpose.msra.mxu0 0.0
        %1108 = vmatprep.subr.mxu0 0.0
        %1109 = vmatpush1.xpose.msra.mxu0 0.0
        %1110 = vmatprep.subr.mxu0 0.0
        %1111 = vmatpush1.xpose.msra.mxu0 0.0
        %1112 = vmatprep.subr.mxu0 0.0
        %1113 = vmatpush1.xpose.msra.mxu0 0.0
        %1114 = vmatprep.subr.mxu0 0.0
        %1115 = vmatpush1.xpose.msra.mxu0 0.0
        %1116 = vmatprep.subr.mxu0 0.0
        %1117 = vmatpush1.xpose.msra.mxu0 0.0
        %1118 = vmatprep.subr.mxu0 0.0
        %1119 = vmatpush1.xpose.msra.mxu0 0.0
        %1120 = vmatprep.mubr.f32.mxu0 0.0
        %1121 = vmatmul.mubr.f32.gmra.mrb[0].mxu0 %v1052
        %v1122 = vpop.f32.mrb[0].mxu0
        %v1123 = vadd.f32 0.0, %v1122
        %v1124 = vpop.f32.mrb[0].mxu0
        %1125 = vdwg.mxu0
        %v1126 = vmul.f32 %v1123, 0.17677669
        %v1127 = vsel %vm630, %v1126, -inf
        %1128 = vmax.xlane.f32.xlu0 %v1127
        %v1129 = vpop.xlane.xlu0 %1128
        %v1130 = vsub.f32 %v1126, %v1129
        %v1131 = vmul.f32 %v1130, 1.442695
        %v1132 = vpow.pop %v1131
        %v1133 = vsel %vm630, %v1132, 0.0
        %1134 = vadd.xlane.f32.xlu0 %v1133
        %v1135 = vpop.xlane.xlu0 %1134
        %v1136 = vrcp.pop %v1135
        %v1137 = vmul.f32 %v1132, %v1136
        %1138 = vrot.lane.b32.xlu0 %v549, 32
        %v1139 = vpop.permute.xlu0 %1138
        %v1142 = vsel %vm630, %v1137, 0
        %1144 = vmatprep.subr.mxu0 0.0
        %1145 = vmatpush1.msra.mxu0 %v1139
        %1146 = vmatprep.subr.mxu0 0.0
        %1147 = vmatpush1.msra.mxu0 0.0
        %1148 = vmatprep.subr.mxu0 0.0
        %1149 = vmatpush1.msra.mxu0 0.0
        %1150 = vmatprep.subr.mxu0 0.0
        %1151 = vmatpush1.msra.mxu0 0.0
        %1152 = vmatprep.subr.mxu0 0.0
        %1153 = vmatpush1.msra.mxu0 0.0
        %1154 = vmatprep.subr.mxu0 0.0
        %1155 = vmatpush1.msra.mxu0 0.0
        %1156 = vmatprep.subr.mxu0 0.0
        %1157 = vmatpush1.msra.mxu0 0.0
        %1158 = vmatprep.subr.mxu0 0.0
        %1159 = vmatpush1.msra.mxu0 0.0
        %1160 = vmatprep.subr.mxu0 0.0
        %1161 = vmatpush1.msra.mxu0 0.0
        %1162 = vmatprep.subr.mxu0 0.0
        %1163 = vmatpush1.msra.mxu0 0.0
        %1164 = vmatprep.subr.mxu0 0.0
        %1165 = vmatpush1.msra.mxu0 0.0
        %1166 = vmatprep.subr.mxu0 0.0
        %1167 = vmatpush1.msra.mxu0 0.0
        %1168 = vmatprep.subr.mxu0 0.0
        %1169 = vmatpush1.msra.mxu0 0.0
        %1170 = vmatprep.subr.mxu0 0.0
        %1171 = vmatpush1.msra.mxu0 0.0
        %1172 = vmatprep.subr.mxu0 0.0
        %1173 = vmatpush1.msra.mxu0 0.0
        %1174 = vmatprep.subr.mxu0 0.0
        %1175 = vmatpush1.msra.mxu0 0.0
        %1176 = vmatprep.subr.mxu0 0.0
        %1177 = vmatpush1.msra.mxu0 0.0
        %1178 = vmatprep.subr.mxu0 0.0
        %1179 = vmatpush1.msra.mxu0 0.0
        %1180 = vmatprep.subr.mxu0 0.0
        %1181 = vmatpush1.msra.mxu0 0.0
        %1182 = vmatprep.subr.mxu0 0.0
        %1183 = vmatpush1.msra.mxu0 0.0
        %1184 = vmatprep.subr.mxu0 0.0
        %1185 = vmatpush1.msra.mxu0 0.0
        %1186 = vmatprep.subr.mxu0 0.0
        %1187 = vmatpush1.msra.mxu0 0.0
        %1188 = vmatprep.subr.mxu0 0.0
        %1189 = vmatpush1.msra.mxu0 0.0
        %1190 = vmatprep.subr.mxu0 0.0
        %1191 = vmatpush1.msra.mxu0 0.0
        %1192 = vmatprep.subr.mxu0 0.0
        %1193 = vmatpush1.msra.mxu0 0.0
        %1194 = vmatprep.subr.mxu0 0.0
        %1195 = vmatpush1.msra.mxu0 0.0
        %1196 = vmatprep.subr.mxu0 0.0
        %1197 = vmatpush1.msra.mxu0 0.0
        %1198 = vmatprep.subr.mxu0 0.0
        %1199 = vmatpush1.msra.mxu0 0.0
        %1200 = vmatprep.subr.mxu0 0.0
        %1201 = vmatpush1.msra.mxu0 0.0
        %1202 = vmatprep.subr.mxu0 0.0
        %1203 = vmatpush1.msra.mxu0 0.0
        %1204 = vmatprep.subr.mxu0 0.0
        %1205 = vmatpush1.msra.mxu0 0.0
        %1206 = vmatprep.subr.mxu0 0.0
        %1207 = vmatpush1.msra.mxu0 0.0
        %1208 = vmatprep.mubr.f32.mxu0 0.0
        %1209 = vmatmul.mubr.f32.gmra.mrb[0].mxu0 %v1142
        %v1210 = vpop.f32.mrb[0].mxu0
        %v1211 = vadd.f32 0.0, %v1210
        %v1212 = vpop.f32.mrb[0].mxu0
        %1213 = vdwg.mxu0
        %1215 = vrot.lane.b32.xlu0 %v879, 32
        %v1216 = vpop.permute.xlu0 %1215
        %1219 = vrot.lane.b32.xlu0 %v1045, 64
        %v1220 = vpop.permute.xlu0 %1219
        %1223 = vrot.lane.b32.xlu0 %v1211, 96
        %v1224 = vpop.permute.xlu0 %1223
        %v1226 = vsel %vm552, %v712, %v1216
        %vm1227 = vcmask 523264
        %v1228 = vsel %vm1227, %v1226, %v1220
        %vm1229 = vcmask 785408
        %v1230 = vsel %vm1229, %v1228, %v1224
        %v1231 = vld [vmem:[#allocation10] sm:$0xff]
        %v1232 = vld [vmem:[#allocation10 + $0x8] sm:$0xff]
        %v1233 = vld [vmem:[#allocation10 + $0x10] sm:$0xff]
        %v1234 = vld [vmem:[#allocation10 + $0x18] sm:$0xff]
        %v1235 = vld [vmem:[#allocation10 + $0x20] sm:$0xff]
        %v1236 = vld [vmem:[#allocation10 + $0x28] sm:$0xff]
        %v1237 = vld [vmem:[#allocation10 + $0x30] sm:$0xff]
        %v1238 = vld [vmem:[#allocation10 + $0x38] sm:$0xff]
        %v1239 = vld [vmem:[#allocation10 + $0x40] sm:$0xff]
        %v1240 = vld [vmem:[#allocation10 + $0x48] sm:$0xff]
        %v1241 = vld [vmem:[#allocation10 + $0x50] sm:$0xff]
        %v1242 = vld [vmem:[#allocation10 + $0x58] sm:$0xff]
        %v1243 = vld [vmem:[#allocation10 + $0x60] sm:$0xff]
        %v1244 = vld [vmem:[#allocation10 + $0x68] sm:$0xff]
        %v1245 = vld [vmem:[#allocation10 + $0x70] sm:$0xff]
        %v1246 = vld [vmem:[#allocation10 + $0x78] sm:$0xff]
        %v1247 = vld [vmem:[#allocation11] sm:$0x1]
        %v1249 = vlaneseq
        %v1250 = vshrl.u32 %v1249, 7
        %v1251 = vsub.s32 0, %v1250
        %v1252 = vrot.slane %v1247, %v1251
        %1254 = vmatprep.subr.mxu0 0.0
        %1255 = vmatpush1.msra.mxu0 %v1231
        %1256 = vmatprep.subr.mxu0 0.0
        %1257 = vmatpush1.msra.mxu0 %v1232
        %1258 = vmatprep.subr.mxu0 0.0
        %1259 = vmatpush1.msra.mxu0 %v1233
        %1260 = vmatprep.subr.mxu0 0.0
        %1261 = vmatpush1.msra.mxu0 %v1234
        %1262 = vmatprep.subr.mxu0 0.0
        %1263 = vmatpush1.msra.mxu0 %v1235
        %1264 = vmatprep.subr.mxu0 0.0
        %1265 = vmatpush1.msra.mxu0 %v1236
        %1266 = vmatprep.subr.mxu0 0.0
        %1267 = vmatpush1.msra.mxu0 %v1237
        %1268 = vmatprep.subr.mxu0 0.0
        %1269 = vmatpush1.msra.mxu0 %v1238
        %1270 = vmatprep.subr.mxu0 0.0
        %1271 = vmatpush1.msra.mxu0 %v1239
        %1272 = vmatprep.subr.mxu0 0.0
        %1273 = vmatpush1.msra.mxu0 %v1240
        %1274 = vmatprep.subr.mxu0 0.0
        %1275 = vmatpush1.msra.mxu0 %v1241
        %1276 = vmatprep.subr.mxu0 0.0
        %1277 = vmatpush1.msra.mxu0 %v1242
        %1278 = vmatprep.subr.mxu0 0.0
        %1279 = vmatpush1.msra.mxu0 %v1243
        %1280 = vmatprep.subr.mxu0 0.0
        %1281 = vmatpush1.msra.mxu0 %v1244
        %1282 = vmatprep.subr.mxu0 0.0
        %1283 = vmatpush1.msra.mxu0 %v1245
        %1284 = vmatprep.subr.mxu0 0.0
        %1285 = vmatpush1.msra.mxu0 %v1246
        %1286 = vmatprep.subr.mxu0 0.0
        %1287 = vmatpush1.msra.mxu0 0.0
        %1288 = vmatprep.subr.mxu0 0.0
        %1289 = vmatpush1.msra.mxu0 0.0
        %1290 = vmatprep.subr.mxu0 0.0
        %1291 = vmatpush1.msra.mxu0 0.0
        %1292 = vmatprep.subr.mxu0 0.0
        %1293 = vmatpush1.msra.mxu0 0.0
        %1294 = vmatprep.subr.mxu0 0.0
        %1295 = vmatpush1.msra.mxu0 0.0
        %1296 = vmatprep.subr.mxu0 0.0
        %1297 = vmatpush1.msra.mxu0 0.0
        %1298 = vmatprep.subr.mxu0 0.0
        %1299 = vmatpush1.msra.mxu0 0.0
        %1300 = vmatprep.subr.mxu0 0.0
        %1301 = vmatpush1.msra.mxu0 0.0
        %1302 = vmatprep.subr.mxu0 0.0
        %1303 = vmatpush1.msra.mxu0 0.0
        %1304 = vmatprep.subr.mxu0 0.0
        %1305 = vmatpush1.msra.mxu0 0.0
        %1306 = vmatprep.subr.mxu0 0.0
        %1307 = vmatpush1.msra.mxu0 0.0
        %1308 = vmatprep.subr.mxu0 0.0
        %1309 = vmatpush1.msra.mxu0 0.0
        %1310 = vmatprep.subr.mxu0 0.0
        %1311 = vmatpush1.msra.mxu0 0.0
        %1312 = vmatprep.subr.mxu0 0.0
        %1313 = vmatpush1.msra.mxu0 0.0
        %1314 = vmatprep.subr.mxu0 0.0
        %1315 = vmatpush1.msra.mxu0 0.0
        %1316 = vmatprep.subr.mxu0 0.0
        %1317 = vmatpush1.msra.mxu0 0.0
        %1318 = vmatprep.mubr.f32.mxu0 0.0
        %1319 = vmatmul.mubr.f32.gmra.mrb[0].mxu0 %v1230
        %v1320 = vpop.f32.mrb[0].mxu0
        %v1321 = vadd.f32 %v1252, %v1320
        %v1322 = vpop.f32.mrb[0].mxu0
        %1323 = vdwg.mxu0
        %1324 = vst [vmem:[%s333] sm:$0xff] %v1321
        %s1325 = sand.u32 %s165, 1
        %s1326 = scalar_lea.sflag [#allocation4], %s1325
        %s1327 = sand.u32 %s165, 1
        %s1328 = smul.addr %s1327, 8
        %s1329 = scalar_lea.vmem [#allocation13], %s1328
        // Predicated region
        $region69: #{tpu_custom_call.1} parent=43 // pred_check
          %p1330 = pneg %p175
        $region70: #{tpu_custom_call.1} parent=43 // pred_check_branch
          %1332 = sbr.rel (%p1330) target = $region72
        $region71: #{tpu_custom_call.1} parent=43 // pred_region
          %s1334 = ssub.s32 128, 128
          %1335 = vsyncadd %s1326, %s1334
          %s1336 = smul.addr %s26, 128
          %s1337 = scalar_lea.hbm %s6, %s1336
          %s1339 = sshll.u32 %s1329, 4
          %s1340 = int_to_ptr.vmem [resolvable:$true] %s1339
          %1342 = dma.vmem_to_hbm [thread:$0]  %s1340, 128, %s1337, %s1326
        $region72: #{tpu_custom_call.1} parent=43 // pred_fallthru
          _
      $region44: #{tpu_custom_call.1} parent=5 // pred_fallthru
        _
      %p1343 = scmp.le.s32.totalorder 2, %s21
      // Predicated region
      $region73: #{tpu_custom_call.1} parent=5 // pred_check
        %p1344 = pneg %p1343
      $region74: #{tpu_custom_call.1} parent=5 // pred_check_branch
        %1346 = sbr.rel (%p1344) target = $region76
      $region75: #{tpu_custom_call.1} parent=5 // pred_region
        %s1347 = ssub.s32 %s21, 2
        // Predicated region
        $region77: #{tpu_custom_call.1} parent=75 // pred_check
          %p1348 = pneg %p181
        $region78: #{tpu_custom_call.1} parent=75 // pred_check_branch
          %1350 = sbr.rel (%p1348) target = $region80
        $region79: #{tpu_custom_call.1} parent=75 // pred_region
          %s1351 = sand.u32 %s166, 1
          %s1352 = scalar_lea.sflag [#allocation4], %s1351
          %s1353 = sand.u32 %s166, 1
          %s1354 = smul.addr %s1353, 8
          %s1355 = scalar_lea.vmem [#allocation13], %s1354
          %1356 = dma.done %s1352, 128
        $region80: #{tpu_custom_call.1} parent=75 // pred_fallthru
          _
      $region76: #{tpu_custom_call.1} parent=5 // pred_fallthru
        _
    $region6: #{tpu_custom_call.1} parent=1 // loop_footer
      %s25 = sadd.s32 1, %s21
    $region7: #{tpu_custom_call.1} parent=1 // loop_footer_branch
      %20 = sbr.rel target = $region3
    $region8: #{tpu_custom_call.1} parent=1 // loop_exit
      _
    %1357 = vsyncpa [#allocation3], 1
    %s1358 = scalar_lea.sflag [#allocation3], 1
    %1359 = vsyncpa %s1358, 1
    %1360 = vsyncpa [#allocation6], 1
    %1361 = vsyncpa [#allocation9], 1
    %1362 = vsyncpa [#allocation12], 1
    %1363 = vsyncpa [#allocation4], 1
    %s1364 = scalar_lea.sflag [#allocation4], 1
    %1365 = vsyncpa %s1364, 1

</llo_original>
